<compile_context>
chip_gen: v6e
topology: v6e:2x2x1
jax: 0.10.0
libtpu: 0.0.40
codegen_flags: <defaults>
</compile_context>

<pallas_src>
import functools
import math

import jax
import jax.numpy as jnp
from jax import lax
from jax.experimental import pallas as pl
from jax.experimental.pallas import tpu as pltpu


# ----------------------------- Pallas kernels ------------------------------


def _encoder_stack_kernel(x_ref, mrow_ref, mcol_ref,
                          wq_ref, bq_ref, wk_ref, bk_ref, wv_ref, bv_ref,
                          wo_ref, bo_ref, g1_ref, b1_ref,
                          wc1_ref, bc1_ref, wc2_ref, bc2_ref,
                          g2_ref, b2_ref,
                          o_ref,
                          act_ref, ctx_ref, pad1_ref, pad2_ref,
                          *, n_heads):
    """One grid step == one encoder layer applied to one batch element."""
    layer = pl.program_id(1)
    n_layers = pl.num_programs(1)

    T, H = act_ref.shape
    F = pad2_ref.shape[1]
    K = wc1_ref.shape[1]
    pad_l = (K - 1) // 2
    dh = H // n_heads
    scale = 1.0 / math.sqrt(dh)

    mrow = mrow_ref[0]                         # [T, 1] f32
    mcol = mcol_ref[0]                         # [1, T] f32
    # additive attention bias: 0 where query & key valid, -1e4 elsewhere
    bias = (mrow * mcol - 1.0) * 1e4           # [T, T] f32

    @pl.when(layer == 0)
    def _():                                   # load the (already masked) embedding
        act_ref[...] = x_ref[0].astype(jnp.float32)

    x = act_ref[...]                           # [T, H] f32 resident activation
    xb = x.astype(jnp.bfloat16)

    # ---- fused-head q/k/v projections: single [T,H] x [H,H] bf16 matmuls ----
    q = (jnp.dot(xb, wq_ref[0], preferred_element_type=jnp.float32)
         + bq_ref[0]) * scale
    k = jnp.dot(xb, wk_ref[0], preferred_element_type=jnp.float32) + bk_ref[0]
    v = jnp.dot(xb, wv_ref[0], preferred_element_type=jnp.float32) + bv_ref[0]
    qb = q.astype(jnp.bfloat16)
    kb = k.astype(jnp.bfloat16)
    vb = v.astype(jnp.bfloat16)

    # ---- per-head scores / softmax / context (heads = contiguous dh slices) ----
    # TODO(synk): relative positional attention bias (window_size) of the VITS
    # MultiHeadAttention is not reproduced here.
    # TODO(synk): for long T, tile the query axis flash-style (online softmax)
    # instead of materializing the full TxT score block per head.
    for h in range(n_heads):
        sl = slice(h * dh, (h + 1) * dh)
        scores = lax.dot_general(qb[:, sl], kb[:, sl], (((1,), (1,)), ((), ())),
                                 preferred_element_type=jnp.float32)  # [T, T]
        scores = scores + bias
        smax = jnp.max(scores, axis=-1, keepdims=True)
        p = jnp.exp(scores - smax)
        denom = jnp.sum(p, axis=-1, keepdims=True)
        p = p * pl.reciprocal(denom, approx=True)
        ctx_ref[:, sl] = jnp.dot(p.astype(jnp.bfloat16), vb[:, sl],
                                 preferred_element_type=jnp.float32)  # [T, dh]

    # ---- fused output projection over the concatenated head context ----
    attn = (jnp.dot(ctx_ref[...].astype(jnp.bfloat16), wo_ref[0],
                    preferred_element_type=jnp.float32) + bo_ref[0])

    # ---- residual + LayerNorm over channels ----
    y = x + attn
    mu = jnp.mean(y, axis=-1, keepdims=True)
    yc = y - mu
    var = jnp.mean(yc * yc, axis=-1, keepdims=True)
    x1 = yc * lax.rsqrt(var + 1e-5) * g1_ref[0] + b1_ref[0]

    # ---- FFN: conv1d(K) -> relu -> conv1d(K), 'same' zero padding, masked ----
    # Zero-padded VMEM scratch + K static shifted slices == K clean matmuls.
    pad1_ref[...] = jnp.zeros_like(pad1_ref)
    pad1_ref[pl.ds(pad_l, T), :] = x1 * mrow
    h1 = jnp.zeros((T, F), jnp.float32)
    for j in range(K):
        h1 = h1 + jnp.dot(pad1_ref[pl.ds(j, T), :].astype(jnp.bfloat16),
                          wc1_ref[0, j], preferred_element_type=jnp.float32)
    h1 = jnp.maximum(h1 + bc1_ref[0], 0.0)

    pad2_ref[...] = jnp.zeros_like(pad2_ref)
    pad2_ref[pl.ds(pad_l, T), :] = h1 * mrow          # torch FFN re-masks here
    h2 = jnp.zeros((T, H), jnp.float32)
    for j in range(K):
        h2 = h2 + jnp.dot(pad2_ref[pl.ds(j, T), :].astype(jnp.bfloat16),
                          wc2_ref[0, j], preferred_element_type=jnp.float32)
    ffn = (h2 + bc2_ref[0]) * mrow

    # ---- residual + LayerNorm ----
    y2 = x1 + ffn
    mu2 = jnp.mean(y2, axis=-1, keepdims=True)
    y2c = y2 - mu2
    var2 = jnp.mean(y2c * y2c, axis=-1, keepdims=True)
    out = y2c * lax.rsqrt(var2 + 1e-5) * g2_ref[0] + b2_ref[0]

    act_ref[...] = out                          # carry activation to next layer

    @pl.when(layer == n_layers - 1)
    def _():                                    # encoder output: x * x_mask
        o_ref[0] = (out * mrow).astype(o_ref.dtype)


def _proj_kernel(x_ref, mcol_ref, wp_ref, bp_ref, stats_ref):
    xb = x_ref[0].astype(jnp.bfloat16)          # [T, H], already masked
    mcol = mcol_ref[0]                          # [1, T]
    # stats written directly in transposed (lane-dense) [C2, T] layout
    stats = lax.dot_general(wp_ref[...], xb, (((1,), (1,)), ((), ())),
                            preferred_element_type=jnp.float32)      # [C2, T]
    stats_ref[0] = ((stats + bp_ref[...]) * mcol).astype(stats_ref.dtype)


# ------------------------------ pallas_call glue ----------------------------


_STACK_PARAM_NAMES = ("wq", "bq", "wk", "bk", "wv", "bv", "wo", "bo",
                      "g1", "b1", "wc1", "bc1", "wc2", "bc2", "g2", "b2")


def _layer_spec(a):
    """BlockSpec selecting layer `l` of a [n_layers, ...] stacked parameter."""
    n_rest = a.ndim - 1
    return pl.BlockSpec((1,) + a.shape[1:],
                        lambda b, l, _n=n_rest: (l,) + (0,) * _n)


def _full_spec(a):
    nd = a.ndim
    return pl.BlockSpec(a.shape, lambda b, _nd=nd: (0,) * _nd)


def encoder_stack(x, mrow, mcol, stacked, n_heads, kernel_size,
                  vmem_limit_bytes=None):
    B, T, H = x.shape
    n_layers = stacked["wq"].shape[0]
    F = stacked["wc1"].shape[-1]
    K = kernel_size
    weights = [stacked[n] for n in _STACK_PARAM_NAMES]
    in_specs = [pl.BlockSpec((1, T, H), lambda b, l: (b, 0, 0)),
                pl.BlockSpec((1, T, 1), lambda b, l: (b, 0, 0)),
                pl.BlockSpec((1, 1, T), lambda b, l: (b, 0, 0))]
    in_specs += [_layer_spec(w) for w in weights]
    kernel = functools.partial(_encoder_stack_kernel, n_heads=n_heads)
    return pl.pallas_call(
        kernel,
        out_shape=jax.ShapeDtypeStruct((B, T, H), jnp.float32),
        grid_spec=pltpu.PrefetchScalarGridSpec(
            num_scalar_prefetch=0, grid=(B, n_layers),
            in_specs=in_specs,
            out_specs=pl.BlockSpec((1, T, H), lambda b, l: (b, 0, 0)),
            scratch_shapes=[pltpu.VMEM((T, H), jnp.float32),       # resident act
                            pltpu.VMEM((T, H), jnp.float32),       # head context
                            pltpu.VMEM((T + K - 1, H), jnp.float32),  # conv1 pad
                            pltpu.VMEM((T + K - 1, F), jnp.float32)]),  # conv2 pad
        compiler_params=pltpu.CompilerParams(
            dimension_semantics=("parallel", "arbitrary"),
            vmem_limit_bytes=vmem_limit_bytes),
    )(x, mrow, mcol, *weights)


def proj_stats(x_enc, mcol, wp, bp, vmem_limit_bytes=None):
    B, T, H = x_enc.shape
    C2 = wp.shape[0]
    in_specs = [pl.BlockSpec((1, T, H), lambda b: (b, 0, 0)),
                pl.BlockSpec((1, 1, T), lambda b: (b, 0, 0)),
                _full_spec(wp), _full_spec(bp)]
    return pl.pallas_call(
        _proj_kernel,
        out_shape=jax.ShapeDtypeStruct((B, C2, T), jnp.float32),
        grid_spec=pltpu.PrefetchScalarGridSpec(
            num_scalar_prefetch=0, grid=(B,),
            in_specs=in_specs,
            out_specs=pl.BlockSpec((1, C2, T), lambda b: (b, 0, 0))),
        compiler_params=pltpu.CompilerParams(
            dimension_semantics=("parallel",),
            vmem_limit_bytes=vmem_limit_bytes),
    )(x_enc, mcol, wp, bp)


# ------------------------------- TextEncoder --------------------------------


class TextEncoderPallas:
    def __init__(self, n_vocab, linguistic_feature_dim, out_channels,
                 hidden_channels, filter_channels, n_heads, n_layers,
                 kernel_size, p_dropout, key):
        del p_dropout  # eval mode: dropout == identity
        self.linguistic_feature_dim = linguistic_feature_dim
        self.out_channels = out_channels
        self.hidden_channels = hidden_channels
        self.n_heads = n_heads
        self.n_layers = n_layers
        self.kernel_size = kernel_size
        H, F, K, L = hidden_channels, filter_channels, kernel_size, n_layers

        keys = iter(jax.random.split(key, 32))

        def nrm(shape, std, dtype=jnp.float32):
            return (std * jax.random.normal(next(keys), shape)).astype(dtype)

        bf = jnp.bfloat16

        # embedding (nn.Embedding if linguistic_feature_dim == 0, else nn.Linear)
        if linguistic_feature_dim == 0:
            self.emb_w = nrm((n_vocab, H), H ** -0.5)
            self.emb_b = None
        else:
            self.emb_w = nrm((linguistic_feature_dim, H), H ** -0.5)
            self.emb_b = jnp.zeros((H,), jnp.float32)

        # encoder params stacked on a leading layer axis; big matrices in bf16
        # (MXU-native, halves weight DMA), biases / LayerNorm params in f32.
        self.stack = dict(
            wq=nrm((L, H, H), 0.05, bf), bq=nrm((L, 1, H), 0.01),
            wk=nrm((L, H, H), 0.05, bf), bk=nrm((L, 1, H), 0.01),
            wv=nrm((L, H, H), 0.05, bf), bv=nrm((L, 1, H), 0.01),
            wo=nrm((L, H, H), 0.05, bf), bo=nrm((L, 1, H), 0.01),
            g1=jnp.ones((L, 1, H), jnp.float32), b1=jnp.zeros((L, 1, H), jnp.float32),
            wc1=nrm((L, K, H, F), 0.05, bf), bc1=nrm((L, 1, F), 0.01),
            wc2=nrm((L, K, F, H), 0.05, bf), bc2=nrm((L, 1, H), 0.01),
            g2=jnp.ones((L, 1, H), jnp.float32), b2=jnp.zeros((L, 1, H), jnp.float32),
        )

        # proj: Conv1d(H, 2*out, 1) stored as [C_out, C_in] (torch layout)
        self.wp = nrm((2 * out_channels, H), 0.05, bf)
        self.bp = nrm((2 * out_channels, 1), 0.01)

    def __call__(self, x, x_lengths):
        H = self.hidden_channels
        if self.linguistic_feature_dim == 0:
            B, T = x.shape
            h = jnp.take(self.emb_w, x, axis=0)               # [B, T, H]
        else:
            B, T, _ = x.shape
            h = jnp.dot(x, self.emb_w) + self.emb_b           # [B, T, H]
        h = h * math.sqrt(H)

        mask = (jnp.arange(T)[None, :] < x_lengths[:, None]).astype(jnp.float32)
        mrow = mask[:, :, None]                               # [B, T, 1]
        mcol = mask[:, None, :]                               # [B, 1, T]

        xk = (h * mrow).astype(jnp.bfloat16)                  # Encoder: x * x_mask
        x_enc = encoder_stack(xk, mrow, mcol, self.stack,
                              self.n_heads, self.kernel_size)  # [B,T,H], masked
        stats = proj_stats(x_enc, mcol, self.wp, self.bp)      # [B, 2*out, T]
        m, logs = jnp.split(stats, 2, axis=1)                  # [B, out, T] each

        x_out = jnp.transpose(x_enc, (0, 2, 1))               # [B, H, T]
        x_mask = mask[:, None, :]                             # [B, 1, T]
        return x_out, m, logs, x_mask


# ----------------------------------- main ------------------------------------


if __name__ == "__main__":
    key = jax.random.PRNGKey(0)
    n_vocab, out_c, H, F, nH, nL, K = 40, 8, 32, 64, 2, 2, 3
    B, T = 2, 16

    enc = TextEncoderPallas(n_vocab, 0, out_c, H, F, nH, nL, K, 0.1, key)

    k_tok, _ = jax.random.split(key)
    tokens = jax.random.randint(k_tok, (B, T), 0, n_vocab, dtype=jnp.int32)
    x_lengths = jnp.array([T, 11], dtype=jnp.int32)

    x, m, logs, x_mask = enc(tokens, x_lengths)
    jax.block_until_ready((x, m, logs, x_mask))

    assert x.shape == (B, H, T)
    assert m.shape == (B, out_c, T)
    assert logs.shape == (B, out_c, T)
    assert x_mask.shape == (B, 1, T)
    assert bool(jnp.all(jnp.isfinite(x))) and bool(jnp.all(jnp.isfinite(m)))
    assert bool(jnp.all(jnp.isfinite(logs)))
    print("KERNEL_OK")
</pallas_src>

<mosaic_0001>
module attributes {stable_mosaic.version = 11 : i64} {
  func.func @_encoder_stack_kernel(%arg0: i32, %arg1: i32, %arg2: memref<1x16x32xbf16, #tpu.memory_space<vmem>>, %arg3: memref<1x16x1xf32, #tpu.memory_space<vmem>>, %arg4: memref<1x1x16xf32, #tpu.memory_space<vmem>>, %arg5: memref<1x32x32xbf16, #tpu.memory_space<vmem>>, %arg6: memref<1x1x32xf32, #tpu.memory_space<vmem>>, %arg7: memref<1x32x32xbf16, #tpu.memory_space<vmem>>, %arg8: memref<1x1x32xf32, #tpu.memory_space<vmem>>, %arg9: memref<1x32x32xbf16, #tpu.memory_space<vmem>>, %arg10: memref<1x1x32xf32, #tpu.memory_space<vmem>>, %arg11: memref<1x32x32xbf16, #tpu.memory_space<vmem>>, %arg12: memref<1x1x32xf32, #tpu.memory_space<vmem>>, %arg13: memref<1x1x32xf32, #tpu.memory_space<vmem>>, %arg14: memref<1x1x32xf32, #tpu.memory_space<vmem>>, %arg15: memref<1x3x32x64xbf16, #tpu.memory_space<vmem>>, %arg16: memref<1x1x64xf32, #tpu.memory_space<vmem>>, %arg17: memref<1x3x64x32xbf16, #tpu.memory_space<vmem>>, %arg18: memref<1x1x32xf32, #tpu.memory_space<vmem>>, %arg19: memref<1x1x32xf32, #tpu.memory_space<vmem>>, %arg20: memref<1x1x32xf32, #tpu.memory_space<vmem>>, %arg21: memref<1x16x32xf32, #tpu.memory_space<vmem>>, %arg22: memref<16x32xf32, #tpu.memory_space<vmem>>, %arg23: memref<16x32xf32, #tpu.memory_space<vmem>>, %arg24: memref<18x32xf32, #tpu.memory_space<vmem>>, %arg25: memref<18x64xf32, #tpu.memory_space<vmem>>) attributes {dimension_semantics = [#tpu.dimension_semantics<parallel>, #tpu.dimension_semantics<arbitrary>], iteration_bounds = array<i64: 2, 2>, scalar_prefetch = 0 : i64, scratch_operands = 4 : i64, tpu.core_type = #tpu.core_type<tc>, window_params = [{transform_indices = @transform_0, window_bounds = array<i64: 1, 16, 32>}, {transform_indices = @transform_1, window_bounds = array<i64: 1, 16, 1>}, {transform_indices = @transform_2, window_bounds = array<i64: 1, 1, 16>}, {transform_indices = @transform_3, window_bounds = array<i64: 1, 32, 32>}, {transform_indices = @transform_4, window_bounds = array<i64: 1, 1, 32>}, {transform_indices = @transform_5, window_bounds = array<i64: 1, 32, 32>}, {transform_indices = @transform_6, window_bounds = array<i64: 1, 1, 32>}, {transform_indices = @transform_7, window_bounds = array<i64: 1, 32, 32>}, {transform_indices = @transform_8, window_bounds = array<i64: 1, 1, 32>}, {transform_indices = @transform_9, window_bounds = array<i64: 1, 32, 32>}, {transform_indices = @transform_10, window_bounds = array<i64: 1, 1, 32>}, {transform_indices = @transform_11, window_bounds = array<i64: 1, 1, 32>}, {transform_indices = @transform_12, window_bounds = array<i64: 1, 1, 32>}, {transform_indices = @transform_13, window_bounds = array<i64: 1, 3, 32, 64>}, {transform_indices = @transform_14, window_bounds = array<i64: 1, 1, 64>}, {transform_indices = @transform_15, window_bounds = array<i64: 1, 3, 64, 32>}, {transform_indices = @transform_16, window_bounds = array<i64: 1, 1, 32>}, {transform_indices = @transform_17, window_bounds = array<i64: 1, 1, 32>}, {transform_indices = @transform_18, window_bounds = array<i64: 1, 1, 32>}, {transform_indices = @transform_19, window_bounds = array<i64: 1, 16, 32>}]} {
    %c0 = arith.constant 0 : index
    %c0_0 = arith.constant 0 : index
    %c0_1 = arith.constant 0 : index
    %0 = vector.load %arg3[%c0, %c0_0, %c0_1] : memref<1x16x1xf32, #tpu.memory_space<vmem>>, vector<1x16x1xf32>
    %1 = vector.shape_cast %0 : vector<1x16x1xf32> to vector<16x1xf32>
    %c0_2 = arith.constant 0 : index
    %c0_3 = arith.constant 0 : index
    %c0_4 = arith.constant 0 : index
    %2 = vector.load %arg4[%c0_2, %c0_3, %c0_4] : memref<1x1x16xf32, #tpu.memory_space<vmem>>, vector<1x1x16xf32>
    %3 = vector.shape_cast %2 : vector<1x1x16xf32> to vector<1x16xf32>
    %4 = vector.broadcast %1 : vector<16x1xf32> to vector<16x16xf32>
    %5 = vector.broadcast %3 : vector<1x16xf32> to vector<16x16xf32>
    %6 = arith.mulf %4, %5 : vector<16x16xf32>
    %cst = arith.constant 1.000000e+00 : f32
    %7 = vector.broadcast %cst : f32 to vector<16x16xf32>
    %8 = arith.subf %6, %7 : vector<16x16xf32>
    %cst_5 = arith.constant 1.000000e+04 : f32
    %9 = vector.broadcast %cst_5 : f32 to vector<16x16xf32>
    %10 = arith.mulf %8, %9 : vector<16x16xf32>
    %c0_i32 = arith.constant 0 : i32
    %11 = arith.cmpi eq, %arg1, %c0_i32 : i32
    %12 = arith.extui %11 : i1 to i32
    %c0_i32_6 = arith.constant 0 : i32
    %13 = arith.cmpi ne, %12, %c0_i32_6 : i32
    scf.if %13 {
      %c0_135 = arith.constant 0 : index
      %c0_136 = arith.constant 0 : index
      %c0_137 = arith.constant 0 : index
      %201 = vector.load %arg2[%c0_135, %c0_136, %c0_137] : memref<1x16x32xbf16, #tpu.memory_space<vmem>>, vector<1x16x32xbf16>
      %202 = vector.shape_cast %201 : vector<1x16x32xbf16> to vector<16x32xbf16>
      %203 = arith.extf %202 : vector<16x32xbf16> to vector<16x32xf32>
      %c0_138 = arith.constant 0 : index
      %c0_139 = arith.constant 0 : index
      %204 = vector.load %arg22[%c0_138, %c0_139] : memref<16x32xf32, #tpu.memory_space<vmem>>, vector<16x32xf32>
      tpu.vector_store %arg22[%c0_138, %c0_139], %203 {strides = array<i32>} : memref<16x32xf32, #tpu.memory_space<vmem>>, vector<16x32xf32>,
    } else {
    }
    %c0_7 = arith.constant 0 : index
    %c0_8 = arith.constant 0 : index
    %14 = vector.load %arg22[%c0_7, %c0_8] : memref<16x32xf32, #tpu.memory_space<vmem>>, vector<16x32xf32>
    %15 = arith.truncf %14 : vector<16x32xf32> to vector<16x32xbf16>
    %c0_9 = arith.constant 0 : index
    %c0_10 = arith.constant 0 : index
    %c0_11 = arith.constant 0 : index
    %16 = vector.load %arg5[%c0_9, %c0_10, %c0_11] : memref<1x32x32xbf16, #tpu.memory_space<vmem>>, vector<1x32x32xbf16>
    %17 = vector.shape_cast %16 : vector<1x32x32xbf16> to vector<32x32xbf16>
    %cst_12 = arith.constant dense<0.000000e+00> : vector<16x32xf32>
    %18 = tpu.matmul %15, %17, %cst_12 {dimension_numbers = #tpu.dot_dimension_numbers<[1], [0], [0], [1], [0, 0, 1, 1], [], []>} : vector<16x32xbf16>, vector<32x32xbf16>, vector<16x32xf32> -> vector<16x32xf32>
    %c0_13 = arith.constant 0 : index
    %c0_14 = arith.constant 0 : index
    %c0_15 = arith.constant 0 : index
    %19 = vector.load %arg6[%c0_13, %c0_14, %c0_15] : memref<1x1x32xf32, #tpu.memory_space<vmem>>, vector<1x1x32xf32>
    %20 = vector.shape_cast %19 : vector<1x1x32xf32> to vector<1x32xf32>
    %21 = vector.broadcast %20 : vector<1x32xf32> to vector<16x32xf32>
    %22 = arith.addf %18, %21 : vector<16x32xf32>
    %cst_16 = arith.constant 2.500000e-01 : f32
    %23 = vector.broadcast %cst_16 : f32 to vector<16x32xf32>
    %24 = arith.mulf %22, %23 : vector<16x32xf32>
    %c0_17 = arith.constant 0 : index
    %c0_18 = arith.constant 0 : index
    %c0_19 = arith.constant 0 : index
    %25 = vector.load %arg7[%c0_17, %c0_18, %c0_19] : memref<1x32x32xbf16, #tpu.memory_space<vmem>>, vector<1x32x32xbf16>
    %26 = vector.shape_cast %25 : vector<1x32x32xbf16> to vector<32x32xbf16>
    %cst_20 = arith.constant dense<0.000000e+00> : vector<16x32xf32>
    %27 = tpu.matmul %15, %26, %cst_20 {dimension_numbers = #tpu.dot_dimension_numbers<[1], [0], [0], [1], [0, 0, 1, 1], [], []>} : vector<16x32xbf16>, vector<32x32xbf16>, vector<16x32xf32> -> vector<16x32xf32>
    %c0_21 = arith.constant 0 : index
    %c0_22 = arith.constant 0 : index
    %c0_23 = arith.constant 0 : index
    %28 = vector.load %arg8[%c0_21, %c0_22, %c0_23] : memref<1x1x32xf32, #tpu.memory_space<vmem>>, vector<1x1x32xf32>
    %29 = vector.shape_cast %28 : vector<1x1x32xf32> to vector<1x32xf32>
    %30 = vector.broadcast %29 : vector<1x32xf32> to vector<16x32xf32>
    %31 = arith.addf %27, %30 : vector<16x32xf32>
    %c0_24 = arith.constant 0 : index
    %c0_25 = arith.constant 0 : index
    %c0_26 = arith.constant 0 : index
    %32 = vector.load %arg9[%c0_24, %c0_25, %c0_26] : memref<1x32x32xbf16, #tpu.memory_space<vmem>>, vector<1x32x32xbf16>
    %33 = vector.shape_cast %32 : vector<1x32x32xbf16> to vector<32x32xbf16>
    %cst_27 = arith.constant dense<0.000000e+00> : vector<16x32xf32>
    %34 = tpu.matmul %15, %33, %cst_27 {dimension_numbers = #tpu.dot_dimension_numbers<[1], [0], [0], [1], [0, 0, 1, 1], [], []>} : vector<16x32xbf16>, vector<32x32xbf16>, vector<16x32xf32> -> vector<16x32xf32>
    %c0_28 = arith.constant 0 : index
    %c0_29 = arith.constant 0 : index
    %c0_30 = arith.constant 0 : index
    %35 = vector.load %arg10[%c0_28, %c0_29, %c0_30] : memref<1x1x32xf32, #tpu.memory_space<vmem>>, vector<1x1x32xf32>
    %36 = vector.shape_cast %35 : vector<1x1x32xf32> to vector<1x32xf32>
    %37 = vector.broadcast %36 : vector<1x32xf32> to vector<16x32xf32>
    %38 = arith.addf %34, %37 : vector<16x32xf32>
    %39 = arith.truncf %24 : vector<16x32xf32> to vector<16x32xbf16>
    %40 = arith.truncf %31 : vector<16x32xf32> to vector<16x32xbf16>
    %41 = arith.truncf %38 : vector<16x32xf32> to vector<16x32xbf16>
    %42 = vector.extract_strided_slice %39 {offsets = [0, 0], sizes = [16, 16], strides = [1, 1]} : vector<16x32xbf16> to vector<16x16xbf16>
    %43 = vector.extract_strided_slice %40 {offsets = [0, 0], sizes = [16, 16], strides = [1, 1]} : vector<16x32xbf16> to vector<16x16xbf16>
    %cst_31 = arith.constant dense<0.000000e+00> : vector<16x16xf32>
    %44 = tpu.matmul %42, %43, %cst_31 {dimension_numbers = #tpu.dot_dimension_numbers<[1], [1], [0], [0], [0, 0, 1, 0], [], []>} : vector<16x16xbf16>, vector<16x16xbf16>, vector<16x16xf32> -> vector<16x16xf32>
    %45 = arith.addf %44, %10 : vector<16x16xf32>
    %cst_32 = arith.constant dense<0xFF800000> : vector<16xf32>
    %46 = vector.multi_reduction <maximumf>, %45, %cst_32 [1] : vector<16x16xf32> to vector<16xf32>
    %47 = vector.shape_cast %46 : vector<16xf32> to vector<16x1xf32>
    %48 = vector.broadcast %47 : vector<16x1xf32> to vector<16x16xf32>
    %49 = arith.subf %45, %48 : vector<16x16xf32>
    %50 = math.exp %49 : vector<16x16xf32>
    %cst_33 = arith.constant dense<0.000000e+00> : vector<16xf32>
    %51 = vector.multi_reduction <add>, %50, %cst_33 [1] : vector<16x16xf32> to vector<16xf32>
    %52 = vector.shape_cast %51 : vector<16xf32> to vector<16x1xf32>
    %53 = tpu.reciprocal %52 {approx = true} : vector<16x1xf32> -> vector<16x1xf32>
    %54 = vector.broadcast %53 : vector<16x1xf32> to vector<16x16xf32>
    %55 = arith.mulf %50, %54 : vector<16x16xf32>
    %56 = arith.truncf %55 : vector<16x16xf32> to vector<16x16xbf16>
    %57 = vector.extract_strided_slice %41 {offsets = [0, 0], sizes = [16, 16], strides = [1, 1]} : vector<16x32xbf16> to vector<16x16xbf16>
    %cst_34 = arith.constant dense<0.000000e+00> : vector<16x16xf32>
    %58 = tpu.matmul %56, %57, %cst_34 {dimension_numbers = #tpu.dot_dimension_numbers<[1], [0], [0], [1], [0, 0, 1, 1], [], []>} : vector<16x16xbf16>, vector<16x16xbf16>, vector<16x16xf32> -> vector<16x16xf32>
    %c0_35 = arith.constant 0 : index
    %c0_36 = arith.constant 0 : index
    %59 = vector.load %arg23[%c0_35, %c0_36] : memref<16x32xf32, #tpu.memory_space<vmem>>, vector<16x16xf32>
    tpu.vector_store %arg23[%c0_35, %c0_36], %58 {strides = array<i32>} : memref<16x32xf32, #tpu.memory_space<vmem>>, vector<16x16xf32>,
    %60 = vector.extract_strided_slice %39 {offsets = [0, 16], sizes = [16, 16], strides = [1, 1]} : vector<16x32xbf16> to vector<16x16xbf16>
    %61 = vector.extract_strided_slice %40 {offsets = [0, 16], sizes = [16, 16], strides = [1, 1]} : vector<16x32xbf16> to vector<16x16xbf16>
    %cst_37 = arith.constant dense<0.000000e+00> : vector<16x16xf32>
    %62 = tpu.matmul %60, %61, %cst_37 {dimension_numbers = #tpu.dot_dimension_numbers<[1], [1], [0], [0], [0, 0, 1, 0], [], []>} : vector<16x16xbf16>, vector<16x16xbf16>, vector<16x16xf32> -> vector<16x16xf32>
    %63 = arith.addf %62, %10 : vector<16x16xf32>
    %cst_38 = arith.constant dense<0xFF800000> : vector<16xf32>
    %64 = vector.multi_reduction <maximumf>, %63, %cst_38 [1] : vector<16x16xf32> to vector<16xf32>
    %65 = vector.shape_cast %64 : vector<16xf32> to vector<16x1xf32>
    %66 = vector.broadcast %65 : vector<16x1xf32> to vector<16x16xf32>
    %67 = arith.subf %63, %66 : vector<16x16xf32>
    %68 = math.exp %67 : vector<16x16xf32>
    %cst_39 = arith.constant dense<0.000000e+00> : vector<16xf32>
    %69 = vector.multi_reduction <add>, %68, %cst_39 [1] : vector<16x16xf32> to vector<16xf32>
    %70 = vector.shape_cast %69 : vector<16xf32> to vector<16x1xf32>
    %71 = tpu.reciprocal %70 {approx = true} : vector<16x1xf32> -> vector<16x1xf32>
    %72 = vector.broadcast %71 : vector<16x1xf32> to vector<16x16xf32>
    %73 = arith.mulf %68, %72 : vector<16x16xf32>
    %74 = arith.truncf %73 : vector<16x16xf32> to vector<16x16xbf16>
    %75 = vector.extract_strided_slice %41 {offsets = [0, 16], sizes = [16, 16], strides = [1, 1]} : vector<16x32xbf16> to vector<16x16xbf16>
    %cst_40 = arith.constant dense<0.000000e+00> : vector<16x16xf32>
    %76 = tpu.matmul %74, %75, %cst_40 {dimension_numbers = #tpu.dot_dimension_numbers<[1], [0], [0], [1], [0, 0, 1, 1], [], []>} : vector<16x16xbf16>, vector<16x16xbf16>, vector<16x16xf32> -> vector<16x16xf32>
    %c0_41 = arith.constant 0 : index
    %c16 = arith.constant 16 : index
    %77 = vector.load %arg23[%c0_41, %c16] : memref<16x32xf32, #tpu.memory_space<vmem>>, vector<16x16xf32>
    tpu.vector_store %arg23[%c0_41, %c16], %76 {strides = array<i32>} : memref<16x32xf32, #tpu.memory_space<vmem>>, vector<16x16xf32>,
    %c0_42 = arith.constant 0 : index
    %c0_43 = arith.constant 0 : index
    %78 = vector.load %arg23[%c0_42, %c0_43] : memref<16x32xf32, #tpu.memory_space<vmem>>, vector<16x32xf32>
    %79 = arith.truncf %78 : vector<16x32xf32> to vector<16x32xbf16>
    %c0_44 = arith.constant 0 : index
    %c0_45 = arith.constant 0 : index
    %c0_46 = arith.constant 0 : index
    %80 = vector.load %arg11[%c0_44, %c0_45, %c0_46] : memref<1x32x32xbf16, #tpu.memory_space<vmem>>, vector<1x32x32xbf16>
    %81 = vector.shape_cast %80 : vector<1x32x32xbf16> to vector<32x32xbf16>
    %cst_47 = arith.constant dense<0.000000e+00> : vector<16x32xf32>
    %82 = tpu.matmul %79, %81, %cst_47 {dimension_numbers = #tpu.dot_dimension_numbers<[1], [0], [0], [1], [0, 0, 1, 1], [], []>} : vector<16x32xbf16>, vector<32x32xbf16>, vector<16x32xf32> -> vector<16x32xf32>
    %c0_48 = arith.constant 0 : index
    %c0_49 = arith.constant 0 : index
    %c0_50 = arith.constant 0 : index
    %83 = vector.load %arg12[%c0_48, %c0_49, %c0_50] : memref<1x1x32xf32, #tpu.memory_space<vmem>>, vector<1x1x32xf32>
    %84 = vector.shape_cast %83 : vector<1x1x32xf32> to vector<1x32xf32>
    %85 = vector.broadcast %84 : vector<1x32xf32> to vector<16x32xf32>
    %86 = arith.addf %82, %85 : vector<16x32xf32>
    %87 = arith.addf %14, %86 : vector<16x32xf32>
    %cst_51 = arith.constant dense<0.000000e+00> : vector<16xf32>
    %88 = vector.multi_reduction <add>, %87, %cst_51 [1] : vector<16x32xf32> to vector<16xf32>
    %89 = vector.shape_cast %88 : vector<16xf32> to vector<16x1xf32>
    %cst_52 = arith.constant 3.200000e+01 : f32
    %90 = vector.broadcast %cst_52 : f32 to vector<16x1xf32>
    %91 = arith.divf %89, %90 : vector<16x1xf32>
    %92 = vector.broadcast %91 : vector<16x1xf32> to vector<16x32xf32>
    %93 = arith.subf %87, %92 : vector<16x32xf32>
    %94 = arith.mulf %93, %93 : vector<16x32xf32>
    %cst_53 = arith.constant dense<0.000000e+00> : vector<16xf32>
    %95 = vector.multi_reduction <add>, %94, %cst_53 [1] : vector<16x32xf32> to vector<16xf32>
    %96 = vector.shape_cast %95 : vector<16xf32> to vector<16x1xf32>
    %cst_54 = arith.constant 3.200000e+01 : f32
    %97 = vector.broadcast %cst_54 : f32 to vector<16x1xf32>
    %98 = arith.divf %96, %97 : vector<16x1xf32>
    %cst_55 = arith.constant 9.99999974E-6 : f32
    %99 = vector.broadcast %cst_55 : f32 to vector<16x1xf32>
    %100 = arith.addf %98, %99 : vector<16x1xf32>
    %101 = math.rsqrt %100 : vector<16x1xf32>
    %102 = vector.broadcast %101 : vector<16x1xf32> to vector<16x32xf32>
    %103 = arith.mulf %93, %102 : vector<16x32xf32>
    %c0_56 = arith.constant 0 : index
    %c0_57 = arith.constant 0 : index
    %c0_58 = arith.constant 0 : index
    %104 = vector.load %arg13[%c0_56, %c0_57, %c0_58] : memref<1x1x32xf32, #tpu.memory_space<vmem>>, vector<1x1x32xf32>
    %105 = vector.shape_cast %104 : vector<1x1x32xf32> to vector<1x32xf32>
    %106 = vector.broadcast %105 : vector<1x32xf32> to vector<16x32xf32>
    %107 = arith.mulf %103, %106 : vector<16x32xf32>
    %c0_59 = arith.constant 0 : index
    %c0_60 = arith.constant 0 : index
    %c0_61 = arith.constant 0 : index
    %108 = vector.load %arg14[%c0_59, %c0_60, %c0_61] : memref<1x1x32xf32, #tpu.memory_space<vmem>>, vector<1x1x32xf32>
    %109 = vector.shape_cast %108 : vector<1x1x32xf32> to vector<1x32xf32>
    %110 = vector.broadcast %109 : vector<1x32xf32> to vector<16x32xf32>
    %111 = arith.addf %107, %110 : vector<16x32xf32>
    %cst_62 = arith.constant 0.000000e+00 : f32
    %112 = vector.broadcast %cst_62 : f32 to vector<18x32xf32>
    %c0_63 = arith.constant 0 : index
    %c0_64 = arith.constant 0 : index
    %113 = vector.load %arg24[%c0_63, %c0_64] : memref<18x32xf32, #tpu.memory_space<vmem>>, vector<18x32xf32>
    tpu.vector_store %arg24[%c0_63, %c0_64], %112 {strides = array<i32>} : memref<18x32xf32, #tpu.memory_space<vmem>>, vector<18x32xf32>,
    %114 = vector.broadcast %1 : vector<16x1xf32> to vector<16x32xf32>
    %115 = arith.mulf %111, %114 : vector<16x32xf32>
    %c1 = arith.constant 1 : index
    %c0_65 = arith.constant 0 : index
    %116 = vector.load %arg24[%c1, %c0_65] : memref<18x32xf32, #tpu.memory_space<vmem>>, vector<16x32xf32>
    tpu.vector_store %arg24[%c1, %c0_65], %115 {strides = array<i32>} : memref<18x32xf32, #tpu.memory_space<vmem>>, vector<16x32xf32>,
    %cst_66 = arith.constant 0.000000e+00 : f32
    %117 = vector.broadcast %cst_66 : f32 to vector<16x64xf32>
    %c0_67 = arith.constant 0 : index
    %c0_68 = arith.constant 0 : index
    %118 = vector.load %arg24[%c0_67, %c0_68] : memref<18x32xf32, #tpu.memory_space<vmem>>, vector<16x32xf32>
    %119 = arith.truncf %118 : vector<16x32xf32> to vector<16x32xbf16>
    %c0_69 = arith.constant 0 : index
    %c0_70 = arith.constant 0 : index
    %c0_71 = arith.constant 0 : index
    %c0_72 = arith.constant 0 : index
    %120 = vector.load %arg15[%c0_69, %c0_70, %c0_71, %c0_72] : memref<1x3x32x64xbf16, #tpu.memory_space<vmem>>, vector<1x1x32x64xbf16>
    %121 = vector.shape_cast %120 : vector<1x1x32x64xbf16> to vector<32x64xbf16>
    %cst_73 = arith.constant dense<0.000000e+00> : vector<16x64xf32>
    %122 = tpu.matmul %119, %121, %cst_73 {dimension_numbers = #tpu.dot_dimension_numbers<[1], [0], [0], [1], [0, 0, 1, 1], [], []>} : vector<16x32xbf16>, vector<32x64xbf16>, vector<16x64xf32> -> vector<16x64xf32>
    %123 = arith.addf %117, %122 : vector<16x64xf32>
    %c1_74 = arith.constant 1 : index
    %c0_75 = arith.constant 0 : index
    %124 = vector.load %arg24[%c1_74, %c0_75] : memref<18x32xf32, #tpu.memory_space<vmem>>, vector<16x32xf32>
    %125 = arith.truncf %124 : vector<16x32xf32> to vector<16x32xbf16>
    %c0_76 = arith.constant 0 : index
    %c1_77 = arith.constant 1 : index
    %c0_78 = arith.constant 0 : index
    %c0_79 = arith.constant 0 : index
    %126 = vector.load %arg15[%c0_76, %c1_77, %c0_78, %c0_79] : memref<1x3x32x64xbf16, #tpu.memory_space<vmem>>, vector<1x1x32x64xbf16>
    %127 = vector.shape_cast %126 : vector<1x1x32x64xbf16> to vector<32x64xbf16>
    %cst_80 = arith.constant dense<0.000000e+00> : vector<16x64xf32>
    %128 = tpu.matmul %125, %127, %cst_80 {dimension_numbers = #tpu.dot_dimension_numbers<[1], [0], [0], [1], [0, 0, 1, 1], [], []>} : vector<16x32xbf16>, vector<32x64xbf16>, vector<16x64xf32> -> vector<16x64xf32>
    %129 = arith.addf %123, %128 : vector<16x64xf32>
    %c2 = arith.constant 2 : index
    %c0_81 = arith.constant 0 : index
    %130 = vector.load %arg24[%c2, %c0_81] : memref<18x32xf32, #tpu.memory_space<vmem>>, vector<16x32xf32>
    %131 = arith.truncf %130 : vector<16x32xf32> to vector<16x32xbf16>
    %c0_82 = arith.constant 0 : index
    %c2_83 = arith.constant 2 : index
    %c0_84 = arith.constant 0 : index
    %c0_85 = arith.constant 0 : index
    %132 = vector.load %arg15[%c0_82, %c2_83, %c0_84, %c0_85] : memref<1x3x32x64xbf16, #tpu.memory_space<vmem>>, vector<1x1x32x64xbf16>
    %133 = vector.shape_cast %132 : vector<1x1x32x64xbf16> to vector<32x64xbf16>
    %cst_86 = arith.constant dense<0.000000e+00> : vector<16x64xf32>
    %134 = tpu.matmul %131, %133, %cst_86 {dimension_numbers = #tpu.dot_dimension_numbers<[1], [0], [0], [1], [0, 0, 1, 1], [], []>} : vector<16x32xbf16>, vector<32x64xbf16>, vector<16x64xf32> -> vector<16x64xf32>
    %135 = arith.addf %129, %134 : vector<16x64xf32>
    %c0_87 = arith.constant 0 : index
    %c0_88 = arith.constant 0 : index
    %c0_89 = arith.constant 0 : index
    %136 = vector.load %arg16[%c0_87, %c0_88, %c0_89] : memref<1x1x64xf32, #tpu.memory_space<vmem>>, vector<1x1x64xf32>
    %137 = vector.shape_cast %136 : vector<1x1x64xf32> to vector<1x64xf32>
    %138 = vector.broadcast %137 : vector<1x64xf32> to vector<16x64xf32>
    %139 = arith.addf %135, %138 : vector<16x64xf32>
    %cst_90 = arith.constant 0.000000e+00 : f32
    %140 = vector.broadcast %cst_90 : f32 to vector<16x64xf32>
    %141 = arith.maximumf %139, %140 : vector<16x64xf32>
    %cst_91 = arith.constant 0.000000e+00 : f32
    %142 = vector.broadcast %cst_91 : f32 to vector<18x64xf32>
    %c0_92 = arith.constant 0 : index
    %c0_93 = arith.constant 0 : index
    %143 = vector.load %arg25[%c0_92, %c0_93] : memref<18x64xf32, #tpu.memory_space<vmem>>, vector<18x64xf32>
    tpu.vector_store %arg25[%c0_92, %c0_93], %142 {strides = array<i32>} : memref<18x64xf32, #tpu.memory_space<vmem>>, vector<18x64xf32>,
    %144 = vector.broadcast %1 : vector<16x1xf32> to vector<16x64xf32>
    %145 = arith.mulf %141, %144 : vector<16x64xf32>
    %c1_94 = arith.constant 1 : index
    %c0_95 = arith.constant 0 : index
    %146 = vector.load %arg25[%c1_94, %c0_95] : memref<18x64xf32, #tpu.memory_space<vmem>>, vector<16x64xf32>
    tpu.vector_store %arg25[%c1_94, %c0_95], %145 {strides = array<i32>} : memref<18x64xf32, #tpu.memory_space<vmem>>, vector<16x64xf32>,
    %cst_96 = arith.constant 0.000000e+00 : f32
    %147 = vector.broadcast %cst_96 : f32 to vector<16x32xf32>
    %c0_97 = arith.constant 0 : index
    %c0_98 = arith.constant 0 : index
    %148 = vector.load %arg25[%c0_97, %c0_98] : memref<18x64xf32, #tpu.memory_space<vmem>>, vector<16x64xf32>
    %149 = arith.truncf %148 : vector<16x64xf32> to vector<16x64xbf16>
    %c0_99 = arith.constant 0 : index
    %c0_100 = arith.constant 0 : index
    %c0_101 = arith.constant 0 : index
    %c0_102 = arith.constant 0 : index
    %150 = vector.load %arg17[%c0_99, %c0_100, %c0_101, %c0_102] : memref<1x3x64x32xbf16, #tpu.memory_space<vmem>>, vector<1x1x64x32xbf16>
    %151 = vector.shape_cast %150 : vector<1x1x64x32xbf16> to vector<64x32xbf16>
    %cst_103 = arith.constant dense<0.000000e+00> : vector<16x32xf32>
    %152 = tpu.matmul %149, %151, %cst_103 {dimension_numbers = #tpu.dot_dimension_numbers<[1], [0], [0], [1], [0, 0, 1, 1], [], []>} : vector<16x64xbf16>, vector<64x32xbf16>, vector<16x32xf32> -> vector<16x32xf32>
    %153 = arith.addf %147, %152 : vector<16x32xf32>
    %c1_104 = arith.constant 1 : index
    %c0_105 = arith.constant 0 : index
    %154 = vector.load %arg25[%c1_104, %c0_105] : memref<18x64xf32, #tpu.memory_space<vmem>>, vector<16x64xf32>
    %155 = arith.truncf %154 : vector<16x64xf32> to vector<16x64xbf16>
    %c0_106 = arith.constant 0 : index
    %c1_107 = arith.constant 1 : index
    %c0_108 = arith.constant 0 : index
    %c0_109 = arith.constant 0 : index
    %156 = vector.load %arg17[%c0_106, %c1_107, %c0_108, %c0_109] : memref<1x3x64x32xbf16, #tpu.memory_space<vmem>>, vector<1x1x64x32xbf16>
    %157 = vector.shape_cast %156 : vector<1x1x64x32xbf16> to vector<64x32xbf16>
    %cst_110 = arith.constant dense<0.000000e+00> : vector<16x32xf32>
    %158 = tpu.matmul %155, %157, %cst_110 {dimension_numbers = #tpu.dot_dimension_numbers<[1], [0], [0], [1], [0, 0, 1, 1], [], []>} : vector<16x64xbf16>, vector<64x32xbf16>, vector<16x32xf32> -> vector<16x32xf32>
    %159 = arith.addf %153, %158 : vector<16x32xf32>
    %c2_111 = arith.constant 2 : index
    %c0_112 = arith.constant 0 : index
    %160 = vector.load %arg25[%c2_111, %c0_112] : memref<18x64xf32, #tpu.memory_space<vmem>>, vector<16x64xf32>
    %161 = arith.truncf %160 : vector<16x64xf32> to vector<16x64xbf16>
    %c0_113 = arith.constant 0 : index
    %c2_114 = arith.constant 2 : index
    %c0_115 = arith.constant 0 : index
    %c0_116 = arith.constant 0 : index
    %162 = vector.load %arg17[%c0_113, %c2_114, %c0_115, %c0_116] : memref<1x3x64x32xbf16, #tpu.memory_space<vmem>>, vector<1x1x64x32xbf16>
    %163 = vector.shape_cast %162 : vector<1x1x64x32xbf16> to vector<64x32xbf16>
    %cst_117 = arith.constant dense<0.000000e+00> : vector<16x32xf32>
    %164 = tpu.matmul %161, %163, %cst_117 {dimension_numbers = #tpu.dot_dimension_numbers<[1], [0], [0], [1], [0, 0, 1, 1], [], []>} : vector<16x64xbf16>, vector<64x32xbf16>, vector<16x32xf32> -> vector<16x32xf32>
    %165 = arith.addf %159, %164 : vector<16x32xf32>
    %c0_118 = arith.constant 0 : index
    %c0_119 = arith.constant 0 : index
    %c0_120 = arith.constant 0 : index
    %166 = vector.load %arg18[%c0_118, %c0_119, %c0_120] : memref<1x1x32xf32, #tpu.memory_space<vmem>>, vector<1x1x32xf32>
    %167 = vector.shape_cast %166 : vector<1x1x32xf32> to vector<1x32xf32>
    %168 = vector.broadcast %167 : vector<1x32xf32> to vector<16x32xf32>
    %169 = arith.addf %165, %168 : vector<16x32xf32>
    %170 = vector.broadcast %1 : vector<16x1xf32> to vector<16x32xf32>
    %171 = arith.mulf %169, %170 : vector<16x32xf32>
    %172 = arith.addf %111, %171 : vector<16x32xf32>
    %cst_121 = arith.constant dense<0.000000e+00> : vector<16xf32>
    %173 = vector.multi_reduction <add>, %172, %cst_121 [1] : vector<16x32xf32> to vector<16xf32>
    %174 = vector.shape_cast %173 : vector<16xf32> to vector<16x1xf32>
    %cst_122 = arith.constant 3.200000e+01 : f32
    %175 = vector.broadcast %cst_122 : f32 to vector<16x1xf32>
    %176 = arith.divf %174, %175 : vector<16x1xf32>
    %177 = vector.broadcast %176 : vector<16x1xf32> to vector<16x32xf32>
    %178 = arith.subf %172, %177 : vector<16x32xf32>
    %179 = arith.mulf %178, %178 : vector<16x32xf32>
    %cst_123 = arith.constant dense<0.000000e+00> : vector<16xf32>
    %180 = vector.multi_reduction <add>, %179, %cst_123 [1] : vector<16x32xf32> to vector<16xf32>
    %181 = vector.shape_cast %180 : vector<16xf32> to vector<16x1xf32>
    %cst_124 = arith.constant 3.200000e+01 : f32
    %182 = vector.broadcast %cst_124 : f32 to vector<16x1xf32>
    %183 = arith.divf %181, %182 : vector<16x1xf32>
    %cst_125 = arith.constant 9.99999974E-6 : f32
    %184 = vector.broadcast %cst_125 : f32 to vector<16x1xf32>
    %185 = arith.addf %183, %184 : vector<16x1xf32>
    %186 = math.rsqrt %185 : vector<16x1xf32>
    %187 = vector.broadcast %186 : vector<16x1xf32> to vector<16x32xf32>
    %188 = arith.mulf %178, %187 : vector<16x32xf32>
    %c0_126 = arith.constant 0 : index
    %c0_127 = arith.constant 0 : index
    %c0_128 = arith.constant 0 : index
    %189 = vector.load %arg19[%c0_126, %c0_127, %c0_128] : memref<1x1x32xf32, #tpu.memory_space<vmem>>, vector<1x1x32xf32>
    %190 = vector.shape_cast %189 : vector<1x1x32xf32> to vector<1x32xf32>
    %191 = vector.broadcast %190 : vector<1x32xf32> to vector<16x32xf32>
    %192 = arith.mulf %188, %191 : vector<16x32xf32>
    %c0_129 = arith.constant 0 : index
    %c0_130 = arith.constant 0 : index
    %c0_131 = arith.constant 0 : index
    %193 = vector.load %arg20[%c0_129, %c0_130, %c0_131] : memref<1x1x32xf32, #tpu.memory_space<vmem>>, vector<1x1x32xf32>
    %194 = vector.shape_cast %193 : vector<1x1x32xf32> to vector<1x32xf32>
    %195 = vector.broadcast %194 : vector<1x32xf32> to vector<16x32xf32>
    %196 = arith.addf %192, %195 : vector<16x32xf32>
    %c0_132 = arith.constant 0 : index
    %c0_133 = arith.constant 0 : index
    %197 = vector.load %arg22[%c0_132, %c0_133] : memref<16x32xf32, #tpu.memory_space<vmem>>, vector<16x32xf32>
    tpu.vector_store %arg22[%c0_132, %c0_133], %196 {strides = array<i32>} : memref<16x32xf32, #tpu.memory_space<vmem>>, vector<16x32xf32>,
    %c1_i32 = arith.constant 1 : i32
    %198 = arith.cmpi eq, %arg1, %c1_i32 : i32
    %199 = arith.extui %198 : i1 to i32
    %c0_i32_134 = arith.constant 0 : i32
    %200 = arith.cmpi ne, %199, %c0_i32_134 : i32
    scf.if %200 {
      %201 = vector.broadcast %1 : vector<16x1xf32> to vector<16x32xf32>
      %202 = arith.mulf %196, %201 : vector<16x32xf32>
      %c0_135 = arith.constant 0 : index
      %c0_136 = arith.constant 0 : index
      %c0_137 = arith.constant 0 : index
      %203 = vector.load %arg21[%c0_135, %c0_136, %c0_137] : memref<1x16x32xf32, #tpu.memory_space<vmem>>, vector<1x16x32xf32>
      %204 = vector.shape_cast %203 : vector<1x16x32xf32> to vector<16x32xf32>
      %205 = vector.shape_cast %202 : vector<16x32xf32> to vector<1x16x32xf32>
      tpu.vector_store %arg21[%c0_135, %c0_136, %c0_137], %205 {strides = array<i32>} : memref<1x16x32xf32, #tpu.memory_space<vmem>>, vector<1x16x32xf32>,
    } else {
    }
    return
  }
  func.func @transform_0(%arg0: i32, %arg1: i32) -> (i32, i32, i32) {
    %c0_i32 = arith.constant 0 : i32
    %c0_i32_0 = arith.constant 0 : i32
    %c0_i32_1 = arith.constant 0 : i32
    return %arg0, %c0_i32, %c0_i32_0 : i32, i32, i32
  }
  func.func @transform_1(%arg0: i32, %arg1: i32) -> (i32, i32, i32) {
    %c0_i32 = arith.constant 0 : i32
    %c0_i32_0 = arith.constant 0 : i32
    %c0_i32_1 = arith.constant 0 : i32
    return %arg0, %c0_i32, %c0_i32_0 : i32, i32, i32
  }
  func.func @transform_2(%arg0: i32, %arg1: i32) -> (i32, i32, i32) {
    %c0_i32 = arith.constant 0 : i32
    %c0_i32_0 = arith.constant 0 : i32
    %c0_i32_1 = arith.constant 0 : i32
    return %arg0, %c0_i32, %c0_i32_0 : i32, i32, i32
  }
  func.func @transform_3(%arg0: i32, %arg1: i32) -> (i32, i32, i32) {
    %c0_i32 = arith.constant 0 : i32
    %c0_i32_0 = arith.constant 0 : i32
    %c0_i32_1 = arith.constant 0 : i32
    return %arg1, %c0_i32, %c0_i32_0 : i32, i32, i32
  }
  func.func @transform_4(%arg0: i32, %arg1: i32) -> (i32, i32, i32) {
    %c0_i32 = arith.constant 0 : i32
    %c0_i32_0 = arith.constant 0 : i32
    %c0_i32_1 = arith.constant 0 : i32
    return %arg1, %c0_i32, %c0_i32_0 : i32, i32, i32
  }
  func.func @transform_5(%arg0: i32, %arg1: i32) -> (i32, i32, i32) {
    %c0_i32 = arith.constant 0 : i32
    %c0_i32_0 = arith.constant 0 : i32
    %c0_i32_1 = arith.constant 0 : i32
    return %arg1, %c0_i32, %c0_i32_0 : i32, i32, i32
  }
  func.func @transform_6(%arg0: i32, %arg1: i32) -> (i32, i32, i32) {
    %c0_i32 = arith.constant 0 : i32
    %c0_i32_0 = arith.constant 0 : i32
    %c0_i32_1 = arith.constant 0 : i32
    return %arg1, %c0_i32, %c0_i32_0 : i32, i32, i32
  }
  func.func @transform_7(%arg0: i32, %arg1: i32) -> (i32, i32, i32) {
    %c0_i32 = arith.constant 0 : i32
    %c0_i32_0 = arith.constant 0 : i32
    %c0_i32_1 = arith.constant 0 : i32
    return %arg1, %c0_i32, %c0_i32_0 : i32, i32, i32
  }
  func.func @transform_8(%arg0: i32, %arg1: i32) -> (i32, i32, i32) {
    %c0_i32 = arith.constant 0 : i32
    %c0_i32_0 = arith.constant 0 : i32
    %c0_i32_1 = arith.constant 0 : i32
    return %arg1, %c0_i32, %c0_i32_0 : i32, i32, i32
  }
  func.func @transform_9(%arg0: i32, %arg1: i32) -> (i32, i32, i32) {
    %c0_i32 = arith.constant 0 : i32
    %c0_i32_0 = arith.constant 0 : i32
    %c0_i32_1 = arith.constant 0 : i32
    return %arg1, %c0_i32, %c0_i32_0 : i32, i32, i32
  }
  func.func @transform_10(%arg0: i32, %arg1: i32) -> (i32, i32, i32) {
    %c0_i32 = arith.constant 0 : i32
    %c0_i32_0 = arith.constant 0 : i32
    %c0_i32_1 = arith.constant 0 : i32
    return %arg1, %c0_i32, %c0_i32_0 : i32, i32, i32
  }
  func.func @transform_11(%arg0: i32, %arg1: i32) -> (i32, i32, i32) {
    %c0_i32 = arith.constant 0 : i32
    %c0_i32_0 = arith.constant 0 : i32
    %c0_i32_1 = arith.constant 0 : i32
    return %arg1, %c0_i32, %c0_i32_0 : i32, i32, i32
  }
  func.func @transform_12(%arg0: i32, %arg1: i32) -> (i32, i32, i32) {
    %c0_i32 = arith.constant 0 : i32
    %c0_i32_0 = arith.constant 0 : i32
    %c0_i32_1 = arith.constant 0 : i32
    return %arg1, %c0_i32, %c0_i32_0 : i32, i32, i32
  }
  func.func @transform_13(%arg0: i32, %arg1: i32) -> (i32, i32, i32, i32) {
    %c0_i32 = arith.constant 0 : i32
    %c0_i32_0 = arith.constant 0 : i32
    %c0_i32_1 = arith.constant 0 : i32
    %c0_i32_2 = arith.constant 0 : i32
    return %arg1, %c0_i32, %c0_i32_0, %c0_i32_1 : i32, i32, i32, i32
  }
  func.func @transform_14(%arg0: i32, %arg1: i32) -> (i32, i32, i32) {
    %c0_i32 = arith.constant 0 : i32
    %c0_i32_0 = arith.constant 0 : i32
    %c0_i32_1 = arith.constant 0 : i32
    return %arg1, %c0_i32, %c0_i32_0 : i32, i32, i32
  }
  func.func @transform_15(%arg0: i32, %arg1: i32) -> (i32, i32, i32, i32) {
    %c0_i32 = arith.constant 0 : i32
    %c0_i32_0 = arith.constant 0 : i32
    %c0_i32_1 = arith.constant 0 : i32
    %c0_i32_2 = arith.constant 0 : i32
    return %arg1, %c0_i32, %c0_i32_0, %c0_i32_1 : i32, i32, i32, i32
  }
  func.func @transform_16(%arg0: i32, %arg1: i32) -> (i32, i32, i32) {
    %c0_i32 = arith.constant 0 : i32
    %c0_i32_0 = arith.constant 0 : i32
    %c0_i32_1 = arith.constant 0 : i32
    return %arg1, %c0_i32, %c0_i32_0 : i32, i32, i32
  }
  func.func @transform_17(%arg0: i32, %arg1: i32) -> (i32, i32, i32) {
    %c0_i32 = arith.constant 0 : i32
    %c0_i32_0 = arith.constant 0 : i32
    %c0_i32_1 = arith.constant 0 : i32
    return %arg1, %c0_i32, %c0_i32_0 : i32, i32, i32
  }
  func.func @transform_18(%arg0: i32, %arg1: i32) -> (i32, i32, i32) {
    %c0_i32 = arith.constant 0 : i32
    %c0_i32_0 = arith.constant 0 : i32
    %c0_i32_1 = arith.constant 0 : i32
    return %arg1, %c0_i32, %c0_i32_0 : i32, i32, i32
  }
  func.func @transform_19(%arg0: i32, %arg1: i32) -> (i32, i32, i32) {
    %c0_i32 = arith.constant 0 : i32
    %c0_i32_0 = arith.constant 0 : i32
    %c0_i32_1 = arith.constant 0 : i32
    return %arg0, %c0_i32, %c0_i32_0 : i32, i32, i32
  }
}

</mosaic_0001>

<llo_original>
// kernel: tpu_custom_call.1
$region0: #{tpu_custom_call.1}
  #allocation0 [shape = 'u32[]', space=smem, size = 0x4, offset = 0x4, fixed_abs, tag = 'smem constant byte address 0x4 - core index']
  #allocation1 [shape = 'u32[144,128]{1,0:T(1,128)}', space=vmem, size = 0x12000, scoped, tag = 'internal scratch']
  #allocation2 [shape = 'f32[16,32]{1,0:T(8,128)}', space=vmem, size = 0x2000, scoped, tag = 'scratch operand']
  #allocation3 [shape = 'f32[16,32]{1,0:T(8,128)}', space=vmem, size = 0x2000, scoped, tag = 'scratch operand']
  #allocation4 [shape = 'f32[18,32]{1,0:T(8,128)}', space=vmem, size = 0x3000, scoped, tag = 'scratch operand']
  #allocation5 [shape = 'f32[18,64]{1,0:T(8,128)}', space=vmem, size = 0x3000, scoped, tag = 'scratch operand']
  %s0 = inlined_call_operand.vmem [shape: bf16[2,16,32], index: 0, kind: input, shape index: {}]
  %s1 = inlined_call_operand.vmem [shape: f32[2,16,1], index: 1, kind: input, shape index: {}]
  %s2 = inlined_call_operand.vmem [shape: f32[2,1,16], index: 2, kind: input, shape index: {}]
  %s3 = inlined_call_operand.vmem [shape: bf16[2,32,32], index: 3, kind: input, shape index: {}]
  %s4 = inlined_call_operand.vmem [shape: f32[2,1,32], index: 4, kind: input, shape index: {}]
  %s5 = inlined_call_operand.vmem [shape: bf16[2,32,32], index: 5, kind: input, shape index: {}]
  %s6 = inlined_call_operand.vmem [shape: f32[2,1,32], index: 6, kind: input, shape index: {}]
  %s7 = inlined_call_operand.vmem [shape: bf16[2,32,32], index: 7, kind: input, shape index: {}]
  %s8 = inlined_call_operand.vmem [shape: f32[2,1,32], index: 8, kind: input, shape index: {}]
  %s9 = inlined_call_operand.vmem [shape: bf16[2,32,32], index: 9, kind: input, shape index: {}]
  %s10 = inlined_call_operand.vmem [shape: f32[2,1,32], index: 10, kind: input, shape index: {}]
  %s11 = inlined_call_operand.vmem [shape: f32[2,1,32], index: 11, kind: input, shape index: {}]
  %s12 = inlined_call_operand.vmem [shape: f32[2,1,32], index: 12, kind: input, shape index: {}]
  %s13 = inlined_call_operand.vmem [shape: bf16[2,3,32,64], index: 13, kind: input, shape index: {}]
  %s14 = inlined_call_operand.vmem [shape: f32[2,1,64], index: 14, kind: input, shape index: {}]
  %s15 = inlined_call_operand.vmem [shape: bf16[2,3,64,32], index: 15, kind: input, shape index: {}]
  %s16 = inlined_call_operand.vmem [shape: f32[2,1,32], index: 16, kind: input, shape index: {}]
  %s17 = inlined_call_operand.vmem [shape: f32[2,1,32], index: 17, kind: input, shape index: {}]
  %s18 = inlined_call_operand.vmem [shape: f32[2,1,32], index: 18, kind: input, shape index: {}]
  %s19 = inlined_call_operand.hbm [shape: f32[2,16,32], index: 19, kind: output, shape index: {}]
  %s20 = sld [smem:[#allocation0]]
  $region117: #{tpu_custom_call.1} parent=0
    _
  %s22 = ssub.s32 1, %s20
  %s23 = scalar_select 0, %s22, %s20
  $region1: #{tpu_custom_call.1} parent=0
    #allocation6 [shape = 'u8[16384]{0}', space=vmem, size = 0x4000, scoped, tag = 'output window, operand 0']
    #allocation7 [shape = 's32[2]{0}', space=sflag, size = 0x8, scoped, tag = 'scoped memory for tpu_custom_call.1']
    %24 = vsyncpa [#allocation7], 0
    %s25 = scalar_lea.sflag [#allocation7], 1
    %26 = vsyncpa %s25, 0
    loop: start=0, step=1, limit=6
    $region2: #{tpu_custom_call.1} parent=1 // loop_pre_header
      _
    $region3: #{tpu_custom_call.1} parent=1 // loop_header
      %s28 = sphi 0, %s32
      %p29 = scmp.ge.s32.totalorder %s28, 6
      %s35 = sphi 0, %s47
      %s36 = sphi 0, %s43
      %s37 = sphi 0, %s35
      %s38 = sphi 0, %s36
      %s39 = sphi 0, %s37
      %s40 = sphi 0, %s38
      %s50 = sphi 0, %s52
      %s53 = sphi 0, %s50
      %s54 = sphi 0, %s53
      %s70 = sphi 0, %s54
      %s76 = sphi 0, %s78
      %s79 = sphi 0, %s76
      %s80 = sphi 0, %s79
      %s96 = sphi 0, %s80
      %s102 = sphi 0, %s104
      %s105 = sphi 0, %s102
      %s106 = sphi 0, %s105
      %s122 = sphi 0, %s106
      %s128 = sphi 0, %s130
      %s131 = sphi 0, %s128
      %s132 = sphi 0, %s131
      %s148 = sphi 0, %s132
      %s154 = sphi 0, %s156
      %s157 = sphi 0, %s154
      %s158 = sphi 0, %s157
      %s174 = sphi 0, %s158
      %s180 = sphi 0, %s182
      %s183 = sphi 0, %s180
      %s184 = sphi 0, %s183
      %s200 = sphi 0, %s184
      %s206 = sphi 0, %s208
      %s209 = sphi 0, %s206
      %s210 = sphi 0, %s209
      %s226 = sphi 0, %s210
      %s232 = sphi 0, %s234
      %s235 = sphi 0, %s232
      %s236 = sphi 0, %s235
      %s252 = sphi 0, %s236
      %s258 = sphi 0, %s260
      %s261 = sphi 0, %s258
      %s262 = sphi 0, %s261
      %s278 = sphi 0, %s262
      %s284 = sphi 0, %s286
      %s287 = sphi 0, %s284
      %s288 = sphi 0, %s287
      %s304 = sphi 0, %s288
      %s310 = sphi 0, %s312
      %s313 = sphi 0, %s310
      %s314 = sphi 0, %s313
      %s330 = sphi 0, %s314
      %s336 = sphi 0, %s338
      %s339 = sphi 0, %s336
      %s340 = sphi 0, %s339
      %s356 = sphi 0, %s340
      %s362 = sphi 0, %s364
      %s365 = sphi 0, %s362
      %s366 = sphi 0, %s365
      %s382 = sphi 0, %s366
      %s388 = sphi 0, %s390
      %s391 = sphi 0, %s388
      %s392 = sphi 0, %s391
      %s408 = sphi 0, %s392
      %s414 = sphi 0, %s416
      %s417 = sphi 0, %s414
      %s418 = sphi 0, %s417
      %s434 = sphi 0, %s418
      %s440 = sphi 0, %s442
      %s443 = sphi 0, %s440
      %s444 = sphi 0, %s443
      %s460 = sphi 0, %s444
      %s466 = sphi 0, %s468
      %s469 = sphi 0, %s466
      %s470 = sphi 0, %s469
      %s486 = sphi 0, %s470
      %s492 = sphi 0, %s494
      %s495 = sphi 0, %s492
      %s496 = sphi 0, %s495
      %s512 = sphi 0, %s496
      %s518 = sphi 0, %s520
      %s521 = sphi 0, %s518
      %s522 = sphi 0, %s521
      %s538 = sphi 0, %s522
      %s544 = sphi 0, %s546
      %s547 = sphi 0, %s544
      %s548 = sphi 0, %s547
      %s564 = sphi 0, %s548
    $region4: #{tpu_custom_call.1} parent=1 // loop_header_branch
      %31 = sbr.rel (%p29) target = $region8
    $region5: #{tpu_custom_call.1} parent=1 // loop_body
      %s33 = ssub.s32 %s28, 1
      %s34 = ssub.s32 %s28, 2
      %s41 = sadd.s32 1, %s36
      %p42 = scmp.ge.s32.totalorder %s41, 2
      %s43 = scalar_select %p42, 0, %s41
      %s44 = sadd.s32 1, %s35
      %s45 = scalar_select %p42, %s44, %s35
      %p46 = scmp.ge.s32.totalorder %s45, 2
      %s47 = scalar_select %p46, 0, %s45
      %s48 = ssub.s32 %s35, %s47
      %p49 = scmp.eq.s32.totalorder %s48, 0
      %s51 = sadd.s32 %s50, 1
      %s52 = scalar_select %p49, %s50, %s51
      %p55 = pneg %p49
      %p56 = scmp.eq.s32.totalorder %s28, 3
      %p57 = por %p55, %p56
      %p58 = scmp.ne.s32.totalorder %s50, %s53
      %p59 = scmp.eq.s32.totalorder %s28, 0
      %p60 = por %p58, %p59
      %p61 = scmp.ne.s32.totalorder %s50, %s53
      %p62 = scmp.eq.s32.totalorder %s33, 3
      %p63 = por %p61, %p62
      %p64 = scmp.ne.s32.totalorder %s53, %s54
      %p65 = scmp.eq.s32.totalorder %s33, 0
      %p66 = por %p64, %p65
      %p67 = scmp.ne.s32.totalorder %s53, %s54
      %p68 = scmp.eq.s32.totalorder %s34, 3
      %p69 = por %p67, %p68
      %p71 = scmp.ne.s32.totalorder %s54, %s70
      %p72 = scmp.eq.s32.totalorder %s34, 0
      %p73 = por %p71, %p72
      %s74 = ssub.s32 %s35, %s47
      %p75 = scmp.eq.s32.totalorder %s74, 0
      %s77 = sadd.s32 %s76, 1
      %s78 = scalar_select %p75, %s76, %s77
      %p81 = pneg %p75
      %p82 = scmp.eq.s32.totalorder %s28, 3
      %p83 = por %p81, %p82
      %p84 = scmp.ne.s32.totalorder %s76, %s79
      %p85 = scmp.eq.s32.totalorder %s28, 0
      %p86 = por %p84, %p85
      %p87 = scmp.ne.s32.totalorder %s76, %s79
      %p88 = scmp.eq.s32.totalorder %s33, 3
      %p89 = por %p87, %p88
      %p90 = scmp.ne.s32.totalorder %s79, %s80
      %p91 = scmp.eq.s32.totalorder %s33, 0
      %p92 = por %p90, %p91
      %p93 = scmp.ne.s32.totalorder %s79, %s80
      %p94 = scmp.eq.s32.totalorder %s34, 3
      %p95 = por %p93, %p94
      %p97 = scmp.ne.s32.totalorder %s80, %s96
      %p98 = scmp.eq.s32.totalorder %s34, 0
      %p99 = por %p97, %p98
      %s100 = ssub.s32 %s35, %s47
      %p101 = scmp.eq.s32.totalorder %s100, 0
      %s103 = sadd.s32 %s102, 1
      %s104 = scalar_select %p101, %s102, %s103
      %p107 = pneg %p101
      %p108 = scmp.eq.s32.totalorder %s28, 3
      %p109 = por %p107, %p108
      %p110 = scmp.ne.s32.totalorder %s102, %s105
      %p111 = scmp.eq.s32.totalorder %s28, 0
      %p112 = por %p110, %p111
      %p113 = scmp.ne.s32.totalorder %s102, %s105
      %p114 = scmp.eq.s32.totalorder %s33, 3
      %p115 = por %p113, %p114
      %p116 = scmp.ne.s32.totalorder %s105, %s106
      %p117 = scmp.eq.s32.totalorder %s33, 0
      %p118 = por %p116, %p117
      %p119 = scmp.ne.s32.totalorder %s105, %s106
      %p120 = scmp.eq.s32.totalorder %s34, 3
      %p121 = por %p119, %p120
      %p123 = scmp.ne.s32.totalorder %s106, %s122
      %p124 = scmp.eq.s32.totalorder %s34, 0
      %p125 = por %p123, %p124
      %s126 = ssub.s32 %s36, %s43
      %p127 = scmp.eq.s32.totalorder %s126, 0
      %s129 = sadd.s32 %s128, 1
      %s130 = scalar_select %p127, %s128, %s129
      %p133 = pneg %p127
      %p134 = scmp.eq.s32.totalorder %s28, 3
      %p135 = por %p133, %p134
      %p136 = scmp.ne.s32.totalorder %s128, %s131
      %p137 = scmp.eq.s32.totalorder %s28, 0
      %p138 = por %p136, %p137
      %p139 = scmp.ne.s32.totalorder %s128, %s131
      %p140 = scmp.eq.s32.totalorder %s33, 3
      %p141 = por %p139, %p140
      %p142 = scmp.ne.s32.totalorder %s131, %s132
      %p143 = scmp.eq.s32.totalorder %s33, 0
      %p144 = por %p142, %p143
      %p145 = scmp.ne.s32.totalorder %s131, %s132
      %p146 = scmp.eq.s32.totalorder %s34, 3
      %p147 = por %p145, %p146
      %p149 = scmp.ne.s32.totalorder %s132, %s148
      %p150 = scmp.eq.s32.totalorder %s34, 0
      %p151 = por %p149, %p150
      %s152 = ssub.s32 %s36, %s43
      %p153 = scmp.eq.s32.totalorder %s152, 0
      %s155 = sadd.s32 %s154, 1
      %s156 = scalar_select %p153, %s154, %s155
      %p159 = pneg %p153
      %p160 = scmp.eq.s32.totalorder %s28, 3
      %p161 = por %p159, %p160
      %p162 = scmp.ne.s32.totalorder %s154, %s157
      %p163 = scmp.eq.s32.totalorder %s28, 0
      %p164 = por %p162, %p163
      %p165 = scmp.ne.s32.totalorder %s154, %s157
      %p166 = scmp.eq.s32.totalorder %s33, 3
      %p167 = por %p165, %p166
      %p168 = scmp.ne.s32.totalorder %s157, %s158
      %p169 = scmp.eq.s32.totalorder %s33, 0
      %p170 = por %p168, %p169
      %p171 = scmp.ne.s32.totalorder %s157, %s158
      %p172 = scmp.eq.s32.totalorder %s34, 3
      %p173 = por %p171, %p172
      %p175 = scmp.ne.s32.totalorder %s158, %s174
      %p176 = scmp.eq.s32.totalorder %s34, 0
      %p177 = por %p175, %p176
      %s178 = ssub.s32 %s36, %s43
      %p179 = scmp.eq.s32.totalorder %s178, 0
      %s181 = sadd.s32 %s180, 1
      %s182 = scalar_select %p179, %s180, %s181
      %p185 = pneg %p179
      %p186 = scmp.eq.s32.totalorder %s28, 3
      %p187 = por %p185, %p186
      %p188 = scmp.ne.s32.totalorder %s180, %s183
      %p189 = scmp.eq.s32.totalorder %s28, 0
      %p190 = por %p188, %p189
      %p191 = scmp.ne.s32.totalorder %s180, %s183
      %p192 = scmp.eq.s32.totalorder %s33, 3
      %p193 = por %p191, %p192
      %p194 = scmp.ne.s32.totalorder %s183, %s184
      %p195 = scmp.eq.s32.totalorder %s33, 0
      %p196 = por %p194, %p195
      %p197 = scmp.ne.s32.totalorder %s183, %s184
      %p198 = scmp.eq.s32.totalorder %s34, 3
      %p199 = por %p197, %p198
      %p201 = scmp.ne.s32.totalorder %s184, %s200
      %p202 = scmp.eq.s32.totalorder %s34, 0
      %p203 = por %p201, %p202
      %s204 = ssub.s32 %s36, %s43
      %p205 = scmp.eq.s32.totalorder %s204, 0
      %s207 = sadd.s32 %s206, 1
      %s208 = scalar_select %p205, %s206, %s207
      %p211 = pneg %p205
      %p212 = scmp.eq.s32.totalorder %s28, 3
      %p213 = por %p211, %p212
      %p214 = scmp.ne.s32.totalorder %s206, %s209
      %p215 = scmp.eq.s32.totalorder %s28, 0
      %p216 = por %p214, %p215
      %p217 = scmp.ne.s32.totalorder %s206, %s209
      %p218 = scmp.eq.s32.totalorder %s33, 3
      %p219 = por %p217, %p218
      %p220 = scmp.ne.s32.totalorder %s209, %s210
      %p221 = scmp.eq.s32.totalorder %s33, 0
      %p222 = por %p220, %p221
      %p223 = scmp.ne.s32.totalorder %s209, %s210
      %p224 = scmp.eq.s32.totalorder %s34, 3
      %p225 = por %p223, %p224
      %p227 = scmp.ne.s32.totalorder %s210, %s226
      %p228 = scmp.eq.s32.totalorder %s34, 0
      %p229 = por %p227, %p228
      %s230 = ssub.s32 %s36, %s43
      %p231 = scmp.eq.s32.totalorder %s230, 0
      %s233 = sadd.s32 %s232, 1
      %s234 = scalar_select %p231, %s232, %s233
      %p237 = pneg %p231
      %p238 = scmp.eq.s32.totalorder %s28, 3
      %p239 = por %p237, %p238
      %p240 = scmp.ne.s32.totalorder %s232, %s235
      %p241 = scmp.eq.s32.totalorder %s28, 0
      %p242 = por %p240, %p241
      %p243 = scmp.ne.s32.totalorder %s232, %s235
      %p244 = scmp.eq.s32.totalorder %s33, 3
      %p245 = por %p243, %p244
      %p246 = scmp.ne.s32.totalorder %s235, %s236
      %p247 = scmp.eq.s32.totalorder %s33, 0
      %p248 = por %p246, %p247
      %p249 = scmp.ne.s32.totalorder %s235, %s236
      %p250 = scmp.eq.s32.totalorder %s34, 3
      %p251 = por %p249, %p250
      %p253 = scmp.ne.s32.totalorder %s236, %s252
      %p254 = scmp.eq.s32.totalorder %s34, 0
      %p255 = por %p253, %p254
      %s256 = ssub.s32 %s36, %s43
      %p257 = scmp.eq.s32.totalorder %s256, 0
      %s259 = sadd.s32 %s258, 1
      %s260 = scalar_select %p257, %s258, %s259
      %p263 = pneg %p257
      %p264 = scmp.eq.s32.totalorder %s28, 3
      %p265 = por %p263, %p264
      %p266 = scmp.ne.s32.totalorder %s258, %s261
      %p267 = scmp.eq.s32.totalorder %s28, 0
      %p268 = por %p266, %p267
      %p269 = scmp.ne.s32.totalorder %s258, %s261
      %p270 = scmp.eq.s32.totalorder %s33, 3
      %p271 = por %p269, %p270
      %p272 = scmp.ne.s32.totalorder %s261, %s262
      %p273 = scmp.eq.s32.totalorder %s33, 0
      %p274 = por %p272, %p273
      %p275 = scmp.ne.s32.totalorder %s261, %s262
      %p276 = scmp.eq.s32.totalorder %s34, 3
      %p277 = por %p275, %p276
      %p279 = scmp.ne.s32.totalorder %s262, %s278
      %p280 = scmp.eq.s32.totalorder %s34, 0
      %p281 = por %p279, %p280
      %s282 = ssub.s32 %s36, %s43
      %p283 = scmp.eq.s32.totalorder %s282, 0
      %s285 = sadd.s32 %s284, 1
      %s286 = scalar_select %p283, %s284, %s285
      %p289 = pneg %p283
      %p290 = scmp.eq.s32.totalorder %s28, 3
      %p291 = por %p289, %p290
      %p292 = scmp.ne.s32.totalorder %s284, %s287
      %p293 = scmp.eq.s32.totalorder %s28, 0
      %p294 = por %p292, %p293
      %p295 = scmp.ne.s32.totalorder %s284, %s287
      %p296 = scmp.eq.s32.totalorder %s33, 3
      %p297 = por %p295, %p296
      %p298 = scmp.ne.s32.totalorder %s287, %s288
      %p299 = scmp.eq.s32.totalorder %s33, 0
      %p300 = por %p298, %p299
      %p301 = scmp.ne.s32.totalorder %s287, %s288
      %p302 = scmp.eq.s32.totalorder %s34, 3
      %p303 = por %p301, %p302
      %p305 = scmp.ne.s32.totalorder %s288, %s304
      %p306 = scmp.eq.s32.totalorder %s34, 0
      %p307 = por %p305, %p306
      %s308 = ssub.s32 %s36, %s43
      %p309 = scmp.eq.s32.totalorder %s308, 0
      %s311 = sadd.s32 %s310, 1
      %s312 = scalar_select %p309, %s310, %s311
      %p315 = pneg %p309
      %p316 = scmp.eq.s32.totalorder %s28, 3
      %p317 = por %p315, %p316
      %p318 = scmp.ne.s32.totalorder %s310, %s313
      %p319 = scmp.eq.s32.totalorder %s28, 0
      %p320 = por %p318, %p319
      %p321 = scmp.ne.s32.totalorder %s310, %s313
      %p322 = scmp.eq.s32.totalorder %s33, 3
      %p323 = por %p321, %p322
      %p324 = scmp.ne.s32.totalorder %s313, %s314
      %p325 = scmp.eq.s32.totalorder %s33, 0
      %p326 = por %p324, %p325
      %p327 = scmp.ne.s32.totalorder %s313, %s314
      %p328 = scmp.eq.s32.totalorder %s34, 3
      %p329 = por %p327, %p328
      %p331 = scmp.ne.s32.totalorder %s314, %s330
      %p332 = scmp.eq.s32.totalorder %s34, 0
      %p333 = por %p331, %p332
      %s334 = ssub.s32 %s36, %s43
      %p335 = scmp.eq.s32.totalorder %s334, 0
      %s337 = sadd.s32 %s336, 1
      %s338 = scalar_select %p335, %s336, %s337
      %p341 = pneg %p335
      %p342 = scmp.eq.s32.totalorder %s28, 3
      %p343 = por %p341, %p342
      %p344 = scmp.ne.s32.totalorder %s336, %s339
      %p345 = scmp.eq.s32.totalorder %s28, 0
      %p346 = por %p344, %p345
      %p347 = scmp.ne.s32.totalorder %s336, %s339
      %p348 = scmp.eq.s32.totalorder %s33, 3
      %p349 = por %p347, %p348
      %p350 = scmp.ne.s32.totalorder %s339, %s340
      %p351 = scmp.eq.s32.totalorder %s33, 0
      %p352 = por %p350, %p351
      %p353 = scmp.ne.s32.totalorder %s339, %s340
      %p354 = scmp.eq.s32.totalorder %s34, 3
      %p355 = por %p353, %p354
      %p357 = scmp.ne.s32.totalorder %s340, %s356
      %p358 = scmp.eq.s32.totalorder %s34, 0
      %p359 = por %p357, %p358
      %s360 = ssub.s32 %s36, %s43
      %p361 = scmp.eq.s32.totalorder %s360, 0
      %s363 = sadd.s32 %s362, 1
      %s364 = scalar_select %p361, %s362, %s363
      %p367 = pneg %p361
      %p368 = scmp.eq.s32.totalorder %s28, 3
      %p369 = por %p367, %p368
      %p370 = scmp.ne.s32.totalorder %s362, %s365
      %p371 = scmp.eq.s32.totalorder %s28, 0
      %p372 = por %p370, %p371
      %p373 = scmp.ne.s32.totalorder %s362, %s365
      %p374 = scmp.eq.s32.totalorder %s33, 3
      %p375 = por %p373, %p374
      %p376 = scmp.ne.s32.totalorder %s365, %s366
      %p377 = scmp.eq.s32.totalorder %s33, 0
      %p378 = por %p376, %p377
      %p379 = scmp.ne.s32.totalorder %s365, %s366
      %p380 = scmp.eq.s32.totalorder %s34, 3
      %p381 = por %p379, %p380
      %p383 = scmp.ne.s32.totalorder %s366, %s382
      %p384 = scmp.eq.s32.totalorder %s34, 0
      %p385 = por %p383, %p384
      %s386 = ssub.s32 %s36, %s43
      %p387 = scmp.eq.s32.totalorder %s386, 0
      %s389 = sadd.s32 %s388, 1
      %s390 = scalar_select %p387, %s388, %s389
      %p393 = pneg %p387
      %p394 = scmp.eq.s32.totalorder %s28, 3
      %p395 = por %p393, %p394
      %p396 = scmp.ne.s32.totalorder %s388, %s391
      %p397 = scmp.eq.s32.totalorder %s28, 0
      %p398 = por %p396, %p397
      %p399 = scmp.ne.s32.totalorder %s388, %s391
      %p400 = scmp.eq.s32.totalorder %s33, 3
      %p401 = por %p399, %p400
      %p402 = scmp.ne.s32.totalorder %s391, %s392
      %p403 = scmp.eq.s32.totalorder %s33, 0
      %p404 = por %p402, %p403
      %p405 = scmp.ne.s32.totalorder %s391, %s392
      %p406 = scmp.eq.s32.totalorder %s34, 3
      %p407 = por %p405, %p406
      %p409 = scmp.ne.s32.totalorder %s392, %s408
      %p410 = scmp.eq.s32.totalorder %s34, 0
      %p411 = por %p409, %p410
      %s412 = ssub.s32 %s36, %s43
      %p413 = scmp.eq.s32.totalorder %s412, 0
      %s415 = sadd.s32 %s414, 1
      %s416 = scalar_select %p413, %s414, %s415
      %p419 = pneg %p413
      %p420 = scmp.eq.s32.totalorder %s28, 3
      %p421 = por %p419, %p420
      %p422 = scmp.ne.s32.totalorder %s414, %s417
      %p423 = scmp.eq.s32.totalorder %s28, 0
      %p424 = por %p422, %p423
      %p425 = scmp.ne.s32.totalorder %s414, %s417
      %p426 = scmp.eq.s32.totalorder %s33, 3
      %p427 = por %p425, %p426
      %p428 = scmp.ne.s32.totalorder %s417, %s418
      %p429 = scmp.eq.s32.totalorder %s33, 0
      %p430 = por %p428, %p429
      %p431 = scmp.ne.s32.totalorder %s417, %s418
      %p432 = scmp.eq.s32.totalorder %s34, 3
      %p433 = por %p431, %p432
      %p435 = scmp.ne.s32.totalorder %s418, %s434
      %p436 = scmp.eq.s32.totalorder %s34, 0
      %p437 = por %p435, %p436
      %s438 = ssub.s32 %s36, %s43
      %p439 = scmp.eq.s32.totalorder %s438, 0
      %s441 = sadd.s32 %s440, 1
      %s442 = scalar_select %p439, %s440, %s441
      %p445 = pneg %p439
      %p446 = scmp.eq.s32.totalorder %s28, 3
      %p447 = por %p445, %p446
      %p448 = scmp.ne.s32.totalorder %s440, %s443
      %p449 = scmp.eq.s32.totalorder %s28, 0
      %p450 = por %p448, %p449
      %p451 = scmp.ne.s32.totalorder %s440, %s443
      %p452 = scmp.eq.s32.totalorder %s33, 3
      %p453 = por %p451, %p452
      %p454 = scmp.ne.s32.totalorder %s443, %s444
      %p455 = scmp.eq.s32.totalorder %s33, 0
      %p456 = por %p454, %p455
      %p457 = scmp.ne.s32.totalorder %s443, %s444
      %p458 = scmp.eq.s32.totalorder %s34, 3
      %p459 = por %p457, %p458
      %p461 = scmp.ne.s32.totalorder %s444, %s460
      %p462 = scmp.eq.s32.totalorder %s34, 0
      %p463 = por %p461, %p462
      %s464 = ssub.s32 %s36, %s43
      %p465 = scmp.eq.s32.totalorder %s464, 0
      %s467 = sadd.s32 %s466, 1
      %s468 = scalar_select %p465, %s466, %s467
      %p471 = pneg %p465
      %p472 = scmp.eq.s32.totalorder %s28, 3
      %p473 = por %p471, %p472
      %p474 = scmp.ne.s32.totalorder %s466, %s469
      %p475 = scmp.eq.s32.totalorder %s28, 0
      %p476 = por %p474, %p475
      %p477 = scmp.ne.s32.totalorder %s466, %s469
      %p478 = scmp.eq.s32.totalorder %s33, 3
      %p479 = por %p477, %p478
      %p480 = scmp.ne.s32.totalorder %s469, %s470
      %p481 = scmp.eq.s32.totalorder %s33, 0
      %p482 = por %p480, %p481
      %p483 = scmp.ne.s32.totalorder %s469, %s470
      %p484 = scmp.eq.s32.totalorder %s34, 3
      %p485 = por %p483, %p484
      %p487 = scmp.ne.s32.totalorder %s470, %s486
      %p488 = scmp.eq.s32.totalorder %s34, 0
      %p489 = por %p487, %p488
      %s490 = ssub.s32 %s36, %s43
      %p491 = scmp.eq.s32.totalorder %s490, 0
      %s493 = sadd.s32 %s492, 1
      %s494 = scalar_select %p491, %s492, %s493
      %p497 = pneg %p491
      %p498 = scmp.eq.s32.totalorder %s28, 3
      %p499 = por %p497, %p498
      %p500 = scmp.ne.s32.totalorder %s492, %s495
      %p501 = scmp.eq.s32.totalorder %s28, 0
      %p502 = por %p500, %p501
      %p503 = scmp.ne.s32.totalorder %s492, %s495
      %p504 = scmp.eq.s32.totalorder %s33, 3
      %p505 = por %p503, %p504
      %p506 = scmp.ne.s32.totalorder %s495, %s496
      %p507 = scmp.eq.s32.totalorder %s33, 0
      %p508 = por %p506, %p507
      %p509 = scmp.ne.s32.totalorder %s495, %s496
      %p510 = scmp.eq.s32.totalorder %s34, 3
      %p511 = por %p509, %p510
      %p513 = scmp.ne.s32.totalorder %s496, %s512
      %p514 = scmp.eq.s32.totalorder %s34, 0
      %p515 = por %p513, %p514
      %s516 = ssub.s32 %s36, %s43
      %p517 = scmp.eq.s32.totalorder %s516, 0
      %s519 = sadd.s32 %s518, 1
      %s520 = scalar_select %p517, %s518, %s519
      %p523 = pneg %p517
      %p524 = scmp.eq.s32.totalorder %s28, 3
      %p525 = por %p523, %p524
      %p526 = scmp.ne.s32.totalorder %s518, %s521
      %p527 = scmp.eq.s32.totalorder %s28, 0
      %p528 = por %p526, %p527
      %p529 = scmp.ne.s32.totalorder %s518, %s521
      %p530 = scmp.eq.s32.totalorder %s33, 3
      %p531 = por %p529, %p530
      %p532 = scmp.ne.s32.totalorder %s521, %s522
      %p533 = scmp.eq.s32.totalorder %s33, 0
      %p534 = por %p532, %p533
      %p535 = scmp.ne.s32.totalorder %s521, %s522
      %p536 = scmp.eq.s32.totalorder %s34, 3
      %p537 = por %p535, %p536
      %p539 = scmp.ne.s32.totalorder %s522, %s538
      %p540 = scmp.eq.s32.totalorder %s34, 0
      %p541 = por %p539, %p540
      %s542 = ssub.s32 %s35, %s47
      %p543 = scmp.eq.s32.totalorder %s542, 0
      %s545 = sadd.s32 %s544, 1
      %s546 = scalar_select %p543, %s544, %s545
      %p549 = pneg %p543
      %p550 = scmp.eq.s32.totalorder %s28, 3
      %p551 = por %p549, %p550
      %p552 = scmp.ne.s32.totalorder %s544, %s547
      %p553 = scmp.eq.s32.totalorder %s28, 0
      %p554 = por %p552, %p553
      %p555 = scmp.ne.s32.totalorder %s544, %s547
      %p556 = scmp.eq.s32.totalorder %s33, 3
      %p557 = por %p555, %p556
      %p558 = scmp.ne.s32.totalorder %s547, %s548
      %p559 = scmp.eq.s32.totalorder %s33, 0
      %p560 = por %p558, %p559
      %p561 = scmp.ne.s32.totalorder %s547, %s548
      %p562 = scmp.eq.s32.totalorder %s34, 3
      %p563 = por %p561, %p562
      %p565 = scmp.ne.s32.totalorder %s548, %s564
      %p566 = scmp.eq.s32.totalorder %s34, 0
      %p567 = por %p565, %p566
      %p568 = scmp.le.s32.totalorder 1, %s28
      %p569 = scmp.lt.s32.totalorder %s28, 5
      %p570 = pnand %p568, %p569
      %p571 = pneg %p570
      // Predicated region
      $region9: #{tpu_custom_call.1} parent=5 // pred_check
        _
      $region10: #{tpu_custom_call.1} parent=5 // pred_check_branch
        %573 = sbr.rel (%p570) target = $region12
      $region11: #{tpu_custom_call.1} parent=5 // pred_region
        %s574 = ssub.s32 %s28, 1
      $region12: #{tpu_custom_call.1} parent=5 // pred_fallthru
        _
      %p575 = scmp.lt.s32.totalorder %s28, 4
      // Predicated region
      $region13: #{tpu_custom_call.1} parent=5 // pred_check
        %p576 = pneg %p575
      $region14: #{tpu_custom_call.1} parent=5 // pred_check_branch
        %578 = sbr.rel (%p576) target = $region16
      $region15: #{tpu_custom_call.1} parent=5 // pred_region
        // Predicated region
        $region17: #{tpu_custom_call.1} parent=15 // pred_check
          %p579 = pneg %p60
        $region18: #{tpu_custom_call.1} parent=15 // pred_check_branch
          %581 = sbr.rel (%p579) target = $region20
        $region19: #{tpu_custom_call.1} parent=15 // pred_region
          %p582 = scmp.lt.s32.totalorder %s35, 1
          %s583 = scalar_select %p582, %s35, 1
          %s584 = smul.addr %s583, 2
          %s585 = smul.addr %s584, 4
          %s586 = scalar_lea.vmem %s0, %s585
        $region20: #{tpu_custom_call.1} parent=15 // pred_fallthru
          _
        // Predicated region
        $region21: #{tpu_custom_call.1} parent=15 // pred_check
          %p587 = pneg %p86
        $region22: #{tpu_custom_call.1} parent=15 // pred_check_branch
          %589 = sbr.rel (%p587) target = $region24
        $region23: #{tpu_custom_call.1} parent=15 // pred_region
          %p590 = scmp.lt.s32.totalorder %s35, 1
          %s591 = scalar_select %p590, %s35, 1
          %s592 = smul.addr %s591, 2
          %s593 = smul.addr %s592, 8
          %s594 = scalar_lea.vmem %s1, %s593
        $region24: #{tpu_custom_call.1} parent=15 // pred_fallthru
          _
        // Predicated region
        $region25: #{tpu_custom_call.1} parent=15 // pred_check
          %p595 = pneg %p112
        $region26: #{tpu_custom_call.1} parent=15 // pred_check_branch
          %597 = sbr.rel (%p595) target = $region28
        $region27: #{tpu_custom_call.1} parent=15 // pred_region
          %p598 = scmp.lt.s32.totalorder %s35, 1
          %s599 = scalar_select %p598, %s35, 1
          %s600 = scalar_lea.vmem %s2, %s599
        $region28: #{tpu_custom_call.1} parent=15 // pred_fallthru
          _
        // Predicated region
        $region29: #{tpu_custom_call.1} parent=15 // pred_check
          %p601 = pneg %p138
        $region30: #{tpu_custom_call.1} parent=15 // pred_check_branch
          %603 = sbr.rel (%p601) target = $region32
        $region31: #{tpu_custom_call.1} parent=15 // pred_region
          %p604 = scmp.lt.s32.totalorder %s36, 1
          %s605 = scalar_select %p604, %s36, 1
          %s606 = smul.addr %s605, 4
          %s607 = smul.addr %s606, 4
          %s608 = scalar_lea.vmem %s3, %s607
        $region32: #{tpu_custom_call.1} parent=15 // pred_fallthru
          _
        // Predicated region
        $region33: #{tpu_custom_call.1} parent=15 // pred_check
          %p609 = pneg %p164
        $region34: #{tpu_custom_call.1} parent=15 // pred_check_branch
          %611 = sbr.rel (%p609) target = $region36
        $region35: #{tpu_custom_call.1} parent=15 // pred_region
          %p612 = scmp.lt.s32.totalorder %s36, 1
          %s613 = scalar_select %p612, %s36, 1
          %s614 = scalar_lea.vmem %s4, %s613
        $region36: #{tpu_custom_call.1} parent=15 // pred_fallthru
          _
        // Predicated region
        $region37: #{tpu_custom_call.1} parent=15 // pred_check
          %p615 = pneg %p190
        $region38: #{tpu_custom_call.1} parent=15 // pred_check_branch
          %617 = sbr.rel (%p615) target = $region40
        $region39: #{tpu_custom_call.1} parent=15 // pred_region
          %p618 = scmp.lt.s32.totalorder %s36, 1
          %s619 = scalar_select %p618, %s36, 1
          %s620 = smul.addr %s619, 4
          %s621 = smul.addr %s620, 4
          %s622 = scalar_lea.vmem %s5, %s621
        $region40: #{tpu_custom_call.1} parent=15 // pred_fallthru
          _
        // Predicated region
        $region41: #{tpu_custom_call.1} parent=15 // pred_check
          %p623 = pneg %p216
        $region42: #{tpu_custom_call.1} parent=15 // pred_check_branch
          %625 = sbr.rel (%p623) target = $region44
        $region43: #{tpu_custom_call.1} parent=15 // pred_region
          %p626 = scmp.lt.s32.totalorder %s36, 1
          %s627 = scalar_select %p626, %s36, 1
          %s628 = scalar_lea.vmem %s6, %s627
        $region44: #{tpu_custom_call.1} parent=15 // pred_fallthru
          _
        // Predicated region
        $region45: #{tpu_custom_call.1} parent=15 // pred_check
          %p629 = pneg %p242
        $region46: #{tpu_custom_call.1} parent=15 // pred_check_branch
          %631 = sbr.rel (%p629) target = $region48
        $region47: #{tpu_custom_call.1} parent=15 // pred_region
          %p632 = scmp.lt.s32.totalorder %s36, 1
          %s633 = scalar_select %p632, %s36, 1
          %s634 = smul.addr %s633, 4
          %s635 = smul.addr %s634, 4
          %s636 = scalar_lea.vmem %s7, %s635
        $region48: #{tpu_custom_call.1} parent=15 // pred_fallthru
          _
        // Predicated region
        $region49: #{tpu_custom_call.1} parent=15 // pred_check
          %p637 = pneg %p268
        $region50: #{tpu_custom_call.1} parent=15 // pred_check_branch
          %639 = sbr.rel (%p637) target = $region52
        $region51: #{tpu_custom_call.1} parent=15 // pred_region
          %p640 = scmp.lt.s32.totalorder %s36, 1
          %s641 = scalar_select %p640, %s36, 1
          %s642 = scalar_lea.vmem %s8, %s641
        $region52: #{tpu_custom_call.1} parent=15 // pred_fallthru
          _
        // Predicated region
        $region53: #{tpu_custom_call.1} parent=15 // pred_check
          %p643 = pneg %p294
        $region54: #{tpu_custom_call.1} parent=15 // pred_check_branch
          %645 = sbr.rel (%p643) target = $region56
        $region55: #{tpu_custom_call.1} parent=15 // pred_region
          %p646 = scmp.lt.s32.totalorder %s36, 1
          %s647 = scalar_select %p646, %s36, 1
          %s648 = smul.addr %s647, 4
          %s649 = smul.addr %s648, 4
          %s650 = scalar_lea.vmem %s9, %s649
        $region56: #{tpu_custom_call.1} parent=15 // pred_fallthru
          _
        // Predicated region
        $region57: #{tpu_custom_call.1} parent=15 // pred_check
          %p651 = pneg %p320
        $region58: #{tpu_custom_call.1} parent=15 // pred_check_branch
          %653 = sbr.rel (%p651) target = $region60
        $region59: #{tpu_custom_call.1} parent=15 // pred_region
          %p654 = scmp.lt.s32.totalorder %s36, 1
          %s655 = scalar_select %p654, %s36, 1
          %s656 = scalar_lea.vmem %s10, %s655
        $region60: #{tpu_custom_call.1} parent=15 // pred_fallthru
          _
        // Predicated region
        $region61: #{tpu_custom_call.1} parent=15 // pred_check
          %p657 = pneg %p346
        $region62: #{tpu_custom_call.1} parent=15 // pred_check_branch
          %659 = sbr.rel (%p657) target = $region64
        $region63: #{tpu_custom_call.1} parent=15 // pred_region
          %p660 = scmp.lt.s32.totalorder %s36, 1
          %s661 = scalar_select %p660, %s36, 1
          %s662 = scalar_lea.vmem %s11, %s661
        $region64: #{tpu_custom_call.1} parent=15 // pred_fallthru
          _
        // Predicated region
        $region65: #{tpu_custom_call.1} parent=15 // pred_check
          %p663 = pneg %p372
        $region66: #{tpu_custom_call.1} parent=15 // pred_check_branch
          %665 = sbr.rel (%p663) target = $region68
        $region67: #{tpu_custom_call.1} parent=15 // pred_region
          %p666 = scmp.lt.s32.totalorder %s36, 1
          %s667 = scalar_select %p666, %s36, 1
          %s668 = scalar_lea.vmem %s12, %s667
        $region68: #{tpu_custom_call.1} parent=15 // pred_fallthru
          _
        // Predicated region
        $region69: #{tpu_custom_call.1} parent=15 // pred_check
          %p669 = pneg %p398
        $region70: #{tpu_custom_call.1} parent=15 // pred_check_branch
          %671 = sbr.rel (%p669) target = $region72
        $region71: #{tpu_custom_call.1} parent=15 // pred_region
          %p672 = scmp.lt.s32.totalorder %s36, 1
          %s673 = scalar_select %p672, %s36, 1
          %s674 = smul.addr %s673, 12
          %s675 = smul.addr %s674, 4
          %s676 = scalar_lea.vmem %s13, %s675
        $region72: #{tpu_custom_call.1} parent=15 // pred_fallthru
          _
        // Predicated region
        $region73: #{tpu_custom_call.1} parent=15 // pred_check
          %p677 = pneg %p424
        $region74: #{tpu_custom_call.1} parent=15 // pred_check_branch
          %679 = sbr.rel (%p677) target = $region76
        $region75: #{tpu_custom_call.1} parent=15 // pred_region
          %p680 = scmp.lt.s32.totalorder %s36, 1
          %s681 = scalar_select %p680, %s36, 1
          %s682 = scalar_lea.vmem %s14, %s681
        $region76: #{tpu_custom_call.1} parent=15 // pred_fallthru
          _
        // Predicated region
        $region77: #{tpu_custom_call.1} parent=15 // pred_check
          %p683 = pneg %p450
        $region78: #{tpu_custom_call.1} parent=15 // pred_check_branch
          %685 = sbr.rel (%p683) target = $region80
        $region79: #{tpu_custom_call.1} parent=15 // pred_region
          %p686 = scmp.lt.s32.totalorder %s36, 1
          %s687 = scalar_select %p686, %s36, 1
          %s688 = smul.addr %s687, 24
          %s689 = smul.addr %s688, 4
          %s690 = scalar_lea.vmem %s15, %s689
        $region80: #{tpu_custom_call.1} parent=15 // pred_fallthru
          _
        // Predicated region
        $region81: #{tpu_custom_call.1} parent=15 // pred_check
          %p691 = pneg %p476
        $region82: #{tpu_custom_call.1} parent=15 // pred_check_branch
          %693 = sbr.rel (%p691) target = $region84
        $region83: #{tpu_custom_call.1} parent=15 // pred_region
          %p694 = scmp.lt.s32.totalorder %s36, 1
          %s695 = scalar_select %p694, %s36, 1
          %s696 = scalar_lea.vmem %s16, %s695
        $region84: #{tpu_custom_call.1} parent=15 // pred_fallthru
          _
        // Predicated region
        $region85: #{tpu_custom_call.1} parent=15 // pred_check
          %p697 = pneg %p502
        $region86: #{tpu_custom_call.1} parent=15 // pred_check_branch
          %699 = sbr.rel (%p697) target = $region88
        $region87: #{tpu_custom_call.1} parent=15 // pred_region
          %p700 = scmp.lt.s32.totalorder %s36, 1
          %s701 = scalar_select %p700, %s36, 1
          %s702 = scalar_lea.vmem %s17, %s701
        $region88: #{tpu_custom_call.1} parent=15 // pred_fallthru
          _
        // Predicated region
        $region89: #{tpu_custom_call.1} parent=15 // pred_check
          %p703 = pneg %p528
        $region90: #{tpu_custom_call.1} parent=15 // pred_check_branch
          %705 = sbr.rel (%p703) target = $region92
        $region91: #{tpu_custom_call.1} parent=15 // pred_region
          %p706 = scmp.lt.s32.totalorder %s36, 1
          %s707 = scalar_select %p706, %s36, 1
          %s708 = scalar_lea.vmem %s18, %s707
        $region92: #{tpu_custom_call.1} parent=15 // pred_fallthru
          _
      $region16: #{tpu_custom_call.1} parent=5 // pred_fallthru
        _
      %p709 = scmp.le.s32.totalorder 1, %s28
      %p710 = scmp.lt.s32.totalorder %s28, 5
      %p711 = pnand %p709, %p710
      %p712 = pneg %p711
      // Predicated region
      $region93: #{tpu_custom_call.1} parent=5 // pred_check
        _
      $region94: #{tpu_custom_call.1} parent=5 // pred_check_branch
        %714 = sbr.rel (%p711) target = $region96
      $region95: #{tpu_custom_call.1} parent=5 // pred_region
        %s715 = ssub.s32 %s28, 1
        %p716 = scmp.lt.s32.totalorder %s37, 1
        %s717 = scalar_select %p716, %s37, 1
        %s718 = smul.addr %s717, 2
        %s719 = smul.addr %s718, 4
        %s720 = scalar_lea.vmem %s0, %s719
        %p721 = pneg %p66
        %p722 = pneg %p63
        %p723 = scmp.lt.s32.totalorder %s37, 1
        %s724 = scalar_select %p723, %s37, 1
        %s725 = smul.addr %s724, 2
        %s726 = smul.addr %s725, 8
        %s727 = scalar_lea.vmem %s1, %s726
        %p728 = pneg %p92
        %p729 = pneg %p89
        %p730 = scmp.lt.s32.totalorder %s37, 1
        %s731 = scalar_select %p730, %s37, 1
        %s732 = scalar_lea.vmem %s2, %s731
        %p733 = pneg %p118
        %p734 = pneg %p115
        %p735 = scmp.lt.s32.totalorder %s38, 1
        %s736 = scalar_select %p735, %s38, 1
        %s737 = smul.addr %s736, 4
        %s738 = smul.addr %s737, 4
        %s739 = scalar_lea.vmem %s3, %s738
        %p740 = pneg %p144
        %p741 = pneg %p141
        %p742 = scmp.lt.s32.totalorder %s38, 1
        %s743 = scalar_select %p742, %s38, 1
        %s744 = scalar_lea.vmem %s4, %s743
        %p745 = pneg %p170
        %p746 = pneg %p167
        %p747 = scmp.lt.s32.totalorder %s38, 1
        %s748 = scalar_select %p747, %s38, 1
        %s749 = smul.addr %s748, 4
        %s750 = smul.addr %s749, 4
        %s751 = scalar_lea.vmem %s5, %s750
        %p752 = pneg %p196
        %p753 = pneg %p193
        %p754 = scmp.lt.s32.totalorder %s38, 1
        %s755 = scalar_select %p754, %s38, 1
        %s756 = scalar_lea.vmem %s6, %s755
        %p757 = pneg %p222
        %p758 = pneg %p219
        %p759 = scmp.lt.s32.totalorder %s38, 1
        %s760 = scalar_select %p759, %s38, 1
        %s761 = smul.addr %s760, 4
        %s762 = smul.addr %s761, 4
        %s763 = scalar_lea.vmem %s7, %s762
        %p764 = pneg %p248
        %p765 = pneg %p245
        %p766 = scmp.lt.s32.totalorder %s38, 1
        %s767 = scalar_select %p766, %s38, 1
        %s768 = scalar_lea.vmem %s8, %s767
        %p769 = pneg %p274
        %p770 = pneg %p271
        %p771 = scmp.lt.s32.totalorder %s38, 1
        %s772 = scalar_select %p771, %s38, 1
        %s773 = smul.addr %s772, 4
        %s774 = smul.addr %s773, 4
        %s775 = scalar_lea.vmem %s9, %s774
        %p776 = pneg %p300
        %p777 = pneg %p297
        %p778 = scmp.lt.s32.totalorder %s38, 1
        %s779 = scalar_select %p778, %s38, 1
        %s780 = scalar_lea.vmem %s10, %s779
        %p781 = pneg %p326
        %p782 = pneg %p323
        %p783 = scmp.lt.s32.totalorder %s38, 1
        %s784 = scalar_select %p783, %s38, 1
        %s785 = scalar_lea.vmem %s11, %s784
        %p786 = pneg %p352
        %p787 = pneg %p349
        %p788 = scmp.lt.s32.totalorder %s38, 1
        %s789 = scalar_select %p788, %s38, 1
        %s790 = scalar_lea.vmem %s12, %s789
        %p791 = pneg %p378
        %p792 = pneg %p375
        %p793 = scmp.lt.s32.totalorder %s38, 1
        %s794 = scalar_select %p793, %s38, 1
        %s795 = smul.addr %s794, 12
        %s796 = smul.addr %s795, 4
        %s797 = scalar_lea.vmem %s13, %s796
        %p798 = pneg %p404
        %p799 = pneg %p401
        %p800 = scmp.lt.s32.totalorder %s38, 1
        %s801 = scalar_select %p800, %s38, 1
        %s802 = scalar_lea.vmem %s14, %s801
        %p803 = pneg %p430
        %p804 = pneg %p427
        %p805 = scmp.lt.s32.totalorder %s38, 1
        %s806 = scalar_select %p805, %s38, 1
        %s807 = smul.addr %s806, 24
        %s808 = smul.addr %s807, 4
        %s809 = scalar_lea.vmem %s15, %s808
        %p810 = pneg %p456
        %p811 = pneg %p453
        %p812 = scmp.lt.s32.totalorder %s38, 1
        %s813 = scalar_select %p812, %s38, 1
        %s814 = scalar_lea.vmem %s16, %s813
        %p815 = pneg %p482
        %p816 = pneg %p479
        %p817 = scmp.lt.s32.totalorder %s38, 1
        %s818 = scalar_select %p817, %s38, 1
        %s819 = scalar_lea.vmem %s17, %s818
        %p820 = pneg %p508
        %p821 = pneg %p505
        %p822 = scmp.lt.s32.totalorder %s38, 1
        %s823 = scalar_select %p822, %s38, 1
        %s824 = scalar_lea.vmem %s18, %s823
        %p825 = pneg %p534
        %p826 = pneg %p531
        %p827 = pneg %p560
        %p828 = pneg %p557
        %s829 = sand.u32 %s547, 1
        %s830 = scalar_lea.sflag [#allocation7], %s829
        %s831 = sand.u32 %s547, 1
        %s832 = smul.addr %s831, 16
        %s833 = scalar_lea.vmem [#allocation6], %s832
        %p834 = scmp.lt.s32.totalorder %s37, 1
        %s835 = scalar_select %p834, %s37, 1
        %s836 = smul.addr %s835, 2
        %s837 = smul.addr %s836, 4
        %s838 = scalar_lea.vmem %s0, %s837
        %p839 = scmp.lt.s32.totalorder %s37, 1
        %s840 = scalar_select %p839, %s37, 1
        %s841 = smul.addr %s840, 2
        %s842 = smul.addr %s841, 8
        %s843 = scalar_lea.vmem %s1, %s842
        %p844 = scmp.lt.s32.totalorder %s37, 1
        %s845 = scalar_select %p844, %s37, 1
        %s846 = scalar_lea.vmem %s2, %s845
        %p847 = scmp.lt.s32.totalorder %s38, 1
        %s848 = scalar_select %p847, %s38, 1
        %s849 = smul.addr %s848, 4
        %s850 = smul.addr %s849, 4
        %s851 = scalar_lea.vmem %s3, %s850
        %p852 = scmp.lt.s32.totalorder %s38, 1
        %s853 = scalar_select %p852, %s38, 1
        %s854 = scalar_lea.vmem %s4, %s853
        %p855 = scmp.lt.s32.totalorder %s38, 1
        %s856 = scalar_select %p855, %s38, 1
        %s857 = smul.addr %s856, 4
        %s858 = smul.addr %s857, 4
        %s859 = scalar_lea.vmem %s5, %s858
        %p860 = scmp.lt.s32.totalorder %s38, 1
        %s861 = scalar_select %p860, %s38, 1
        %s862 = scalar_lea.vmem %s6, %s861
        %p863 = scmp.lt.s32.totalorder %s38, 1
        %s864 = scalar_select %p863, %s38, 1
        %s865 = smul.addr %s864, 4
        %s866 = smul.addr %s865, 4
        %s867 = scalar_lea.vmem %s7, %s866
        %p868 = scmp.lt.s32.totalorder %s38, 1
        %s869 = scalar_select %p868, %s38, 1
        %s870 = scalar_lea.vmem %s8, %s869
        %p871 = scmp.lt.s32.totalorder %s38, 1
        %s872 = scalar_select %p871, %s38, 1
        %s873 = smul.addr %s872, 4
        %s874 = smul.addr %s873, 4
        %s875 = scalar_lea.vmem %s9, %s874
        %p876 = scmp.lt.s32.totalorder %s38, 1
        %s877 = scalar_select %p876, %s38, 1
        %s878 = scalar_lea.vmem %s10, %s877
        %p879 = scmp.lt.s32.totalorder %s38, 1
        %s880 = scalar_select %p879, %s38, 1
        %s881 = scalar_lea.vmem %s11, %s880
        %p882 = scmp.lt.s32.totalorder %s38, 1
        %s883 = scalar_select %p882, %s38, 1
        %s884 = scalar_lea.vmem %s12, %s883
        %p885 = scmp.lt.s32.totalorder %s38, 1
        %s886 = scalar_select %p885, %s38, 1
        %s887 = smul.addr %s886, 12
        %s888 = smul.addr %s887, 4
        %s889 = scalar_lea.vmem %s13, %s888
        %p890 = scmp.lt.s32.totalorder %s38, 1
        %s891 = scalar_select %p890, %s38, 1
        %s892 = scalar_lea.vmem %s14, %s891
        %p893 = scmp.lt.s32.totalorder %s38, 1
        %s894 = scalar_select %p893, %s38, 1
        %s895 = smul.addr %s894, 24
        %s896 = smul.addr %s895, 4
        %s897 = scalar_lea.vmem %s15, %s896
        %p898 = scmp.lt.s32.totalorder %s38, 1
        %s899 = scalar_select %p898, %s38, 1
        %s900 = scalar_lea.vmem %s16, %s899
        %p901 = scmp.lt.s32.totalorder %s38, 1
        %s902 = scalar_select %p901, %s38, 1
        %s903 = scalar_lea.vmem %s17, %s902
        %p904 = scmp.lt.s32.totalorder %s38, 1
        %s905 = scalar_select %p904, %s38, 1
        %s906 = scalar_lea.vmem %s18, %s905
        %v908 = vld [vmem:[%s843] sm:$0xff]
        %v909 = vld [vmem:[%s843 + $0x8] sm:$0xff]
        %v910 = vld [vmem:[%s846] sm:$0x1]
        %912 = vset.pattern.permute.xlu0 0
        %913 = vperm.xlu0 %912, %v908
        %v914 = vpop.permute.xlu0 %913
        %917 = vset.pattern.permute.xlu0 0
        %918 = vperm.xlu0 %917, %v909
        %v919 = vpop.permute.xlu0 %918
        %v922 = vlaneseq
        %v923 = vshrl.u32 %v922, 7
        %v924 = vsub.s32 0, %v923
        %v925 = vrot.slane %v910, %v924
        %v927 = vmul.f32 %v914, %v925
        %v928 = vmul.f32 %v919, %v925
        %v929 = vsub.f32 %v927, 1.0
        %v930 = vsub.f32 %v928, 1.0
        %v931 = vmul.f32 %v929, 10000.0
        %v932 = vmul.f32 %v930, 10000.0
        %p933 = scmp.eq.s32.totalorder %s38, 0
        // Predicated region
        $region97: #{tpu_custom_call.1} parent=95 // pred_check
          %p934 = pneg %p933
        $region98: #{tpu_custom_call.1} parent=95 // pred_check_branch
          %936 = sbr.rel (%p934) target = $region100
        $region99: #{tpu_custom_call.1} parent=95 // pred_region
          %v937 = vld [vmem:[%s838] sm:$0xf]
          %v938 = vld [vmem:[%s838 + $0x4] sm:$0xf]
          %v939 = vunpack.c.l.bf16 %v937
          %v940 = vunpack.c.l.bf16 %v938
          %vm941 = vcmask 261120
          %942 = vst.msk [vmem:[#allocation2] sm:$0xff] %vm941, %v939
          %943 = vst.msk [vmem:[#allocation2 + $0x8] sm:$0xff] %vm941, %v940
        $region100: #{tpu_custom_call.1} parent=95 // pred_fallthru
          _
        %v944 = vld [vmem:[#allocation2] sm:$0xff]
        %v945 = vld [vmem:[#allocation2 + $0x8] sm:$0xff]
        %v946 = vpack.c.bf16 %v945, %v944
        %v947 = vld [vmem:[%s851] sm:$0xf]
        %v948 = vld [vmem:[%s851 + $0x4] sm:$0xf]
        %v949 = vld [vmem:[%s851 + $0x8] sm:$0xf]
        %v950 = vld [vmem:[%s851 + $0xc] sm:$0xf]
        %v951 = vld [vmem:[%s854] sm:$0x1]
        %v953 = vlaneseq
        %v954 = vshrl.u32 %v953, 7
        %v955 = vsub.s32 0, %v954
        %v956 = vrot.slane %v951, %v955
        %v962 = vunpack.c.l.b16 %v947
        %v963 = vunpack.c.l.b16 %v948
        %v964 = vunpack.c.l.b16 %v949
        %v965 = vunpack.c.l.b16 %v950
        %v966 = vpack.c.b16 %v963, %v962
        %v967 = vpack.c.b16 %v965, %v964
        %vm970 = vcmask 261120
        %v972 = vsel %vm970, %v946, 0
        %974 = vmatprep.subr.bf16.mxu0 0
        %975 = vmatpush1.bf16.msra.mxu0 0
        %976 = vmatprep.subr.bf16.mxu0 0
        %977 = vmatpush1.bf16.msra.mxu0 0
        %978 = vmatprep.subr.bf16.mxu0 0
        %979 = vmatpush1.bf16.msra.mxu0 0
        %980 = vmatprep.subr.bf16.mxu0 0
        %981 = vmatpush1.bf16.msra.mxu0 0
        %982 = vmatprep.subr.bf16.mxu0 0
        %983 = vmatpush1.bf16.msra.mxu0 0
        %984 = vmatprep.subr.bf16.mxu0 0
        %985 = vmatpush1.bf16.msra.mxu0 0
        %986 = vmatprep.subr.bf16.mxu0 0
        %987 = vmatpush1.bf16.msra.mxu0 %v967
        %988 = vmatprep.subr.bf16.mxu0 0
        %989 = vmatpush1.bf16.msra.mxu0 %v966
        %990 = vmatprep.subr.bf16.mxu0 0
        %991 = vmatpush2.bf16.msra.mxu0 0
        %992 = vmatprep.subr.bf16.mxu0 0
        %993 = vmatpush2.bf16.msra.mxu0 0
        %994 = vmatprep.subr.bf16.mxu0 0
        %995 = vmatpush2.bf16.msra.mxu0 0
        %996 = vmatprep.subr.bf16.mxu0 0
        %997 = vmatpush2.bf16.msra.mxu0 0
        %998 = vmatprep.subr.bf16.mxu0 0
        %999 = vmatpush2.bf16.msra.mxu0 0
        %1000 = vmatprep.subr.bf16.mxu0 0
        %1001 = vmatpush2.bf16.msra.mxu0 0
        %1002 = vmatprep.subr.bf16.mxu0 0
        %1003 = vmatpush2.bf16.msra.mxu0 0
        %1004 = vmatprep.subr.bf16.mxu0 0
        %1005 = vmatpush2.bf16.msra.mxu0 0
        %1006 = vmatprep.mubr.bf16.mxu0 0
        %1007 = vmatmul.mubr.bf16.gmra.mxu0 %v972
        %v1008 = vpop.f32.mrf.mxu0
        %v1009 = vadd.f32 %v956, %v1008
        %v1010 = vpop.f32.mrf.mxu0
        %v1011 = vpop.f32.mrf.mxu0
        %v1012 = vadd.f32 %v956, %v1011
        %v1013 = vpop.f32.mrf.mxu0
        %1014 = vdwg.mxu0
        %v1015 = vmul.f32 %v1009, 0.25
        %v1016 = vmul.f32 %v1012, 0.25
        %v1017 = vld [vmem:[%s859] sm:$0xf]
        %v1018 = vld [vmem:[%s859 + $0x4] sm:$0xf]
        %v1019 = vld [vmem:[%s859 + $0x8] sm:$0xf]
        %v1020 = vld [vmem:[%s859 + $0xc] sm:$0xf]
        %v1021 = vld [vmem:[%s862] sm:$0x1]
        %v1023 = vlaneseq
        %v1024 = vshrl.u32 %v1023, 7
        %v1025 = vsub.s32 0, %v1024
        %v1026 = vrot.slane %v1021, %v1025
        %v1032 = vunpack.c.l.b16 %v1017
        %v1033 = vunpack.c.l.b16 %v1018
        %v1034 = vunpack.c.l.b16 %v1019
        %v1035 = vunpack.c.l.b16 %v1020
        %v1036 = vpack.c.b16 %v1033, %v1032
        %v1037 = vpack.c.b16 %v1035, %v1034
        %1040 = vmatprep.subr.bf16.mxu0 0
        %1041 = vmatpush1.bf16.msra.mxu0 0
        %1042 = vmatprep.subr.bf16.mxu0 0
        %1043 = vmatpush1.bf16.msra.mxu0 0
        %1044 = vmatprep.subr.bf16.mxu0 0
        %1045 = vmatpush1.bf16.msra.mxu0 0
        %1046 = vmatprep.subr.bf16.mxu0 0
        %1047 = vmatpush1.bf16.msra.mxu0 0
        %1048 = vmatprep.subr.bf16.mxu0 0
        %1049 = vmatpush1.bf16.msra.mxu0 0
        %1050 = vmatprep.subr.bf16.mxu0 0
        %1051 = vmatpush1.bf16.msra.mxu0 0
        %1052 = vmatprep.subr.bf16.mxu0 0
        %1053 = vmatpush1.bf16.msra.mxu0 %v1037
        %1054 = vmatprep.subr.bf16.mxu0 0
        %1055 = vmatpush1.bf16.msra.mxu0 %v1036
        %1056 = vmatprep.subr.bf16.mxu0 0
        %1057 = vmatpush2.bf16.msra.mxu0 0
        %1058 = vmatprep.subr.bf16.mxu0 0
        %1059 = vmatpush2.bf16.msra.mxu0 0
        %1060 = vmatprep.subr.bf16.mxu0 0
        %1061 = vmatpush2.bf16.msra.mxu0 0
        %1062 = vmatprep.subr.bf16.mxu0 0
        %1063 = vmatpush2.bf16.msra.mxu0 0
        %1064 = vmatprep.subr.bf16.mxu0 0
        %1065 = vmatpush2.bf16.msra.mxu0 0
        %1066 = vmatprep.subr.bf16.mxu0 0
        %1067 = vmatpush2.bf16.msra.mxu0 0
        %1068 = vmatprep.subr.bf16.mxu0 0
        %1069 = vmatpush2.bf16.msra.mxu0 0
        %1070 = vmatprep.subr.bf16.mxu0 0
        %1071 = vmatpush2.bf16.msra.mxu0 0
        %1072 = vmatprep.mubr.bf16.mxu0 0
        %1073 = vmatmul.mubr.bf16.gmra.mxu0 %v972
        %v1074 = vpop.f32.mrf.mxu0
        %v1075 = vadd.f32 %v1026, %v1074
        %v1076 = vpop.f32.mrf.mxu0
        %v1077 = vpop.f32.mrf.mxu0
        %v1078 = vadd.f32 %v1026, %v1077
        %v1079 = vpop.f32.mrf.mxu0
        %1080 = vdwg.mxu0
        %v1081 = vld [vmem:[%s867] sm:$0xf]
        %v1082 = vld [vmem:[%s867 + $0x4] sm:$0xf]
        %v1083 = vld [vmem:[%s867 + $0x8] sm:$0xf]
        %v1084 = vld [vmem:[%s867 + $0xc] sm:$0xf]
        %v1085 = vld [vmem:[%s870] sm:$0x1]
        %v1087 = vlaneseq
        %v1088 = vshrl.u32 %v1087, 7
        %v1089 = vsub.s32 0, %v1088
        %v1090 = vrot.slane %v1085, %v1089
        %v1096 = vunpack.c.l.b16 %v1081
        %v1097 = vunpack.c.l.b16 %v1082
        %v1098 = vunpack.c.l.b16 %v1083
        %v1099 = vunpack.c.l.b16 %v1084
        %v1100 = vpack.c.b16 %v1097, %v1096
        %v1101 = vpack.c.b16 %v1099, %v1098
        %1104 = vmatprep.subr.bf16.mxu0 0
        %1105 = vmatpush1.bf16.msra.mxu0 0
        %1106 = vmatprep.subr.bf16.mxu0 0
        %1107 = vmatpush1.bf16.msra.mxu0 0
        %1108 = vmatprep.subr.bf16.mxu0 0
        %1109 = vmatpush1.bf16.msra.mxu0 0
        %1110 = vmatprep.subr.bf16.mxu0 0
        %1111 = vmatpush1.bf16.msra.mxu0 0
        %1112 = vmatprep.subr.bf16.mxu0 0
        %1113 = vmatpush1.bf16.msra.mxu0 0
        %1114 = vmatprep.subr.bf16.mxu0 0
        %1115 = vmatpush1.bf16.msra.mxu0 0
        %1116 = vmatprep.subr.bf16.mxu0 0
        %1117 = vmatpush1.bf16.msra.mxu0 %v1101
        %1118 = vmatprep.subr.bf16.mxu0 0
        %1119 = vmatpush1.bf16.msra.mxu0 %v1100
        %1120 = vmatprep.subr.bf16.mxu0 0
        %1121 = vmatpush2.bf16.msra.mxu0 0
        %1122 = vmatprep.subr.bf16.mxu0 0
        %1123 = vmatpush2.bf16.msra.mxu0 0
        %1124 = vmatprep.subr.bf16.mxu0 0
        %1125 = vmatpush2.bf16.msra.mxu0 0
        %1126 = vmatprep.subr.bf16.mxu0 0
        %1127 = vmatpush2.bf16.msra.mxu0 0
        %1128 = vmatprep.subr.bf16.mxu0 0
        %1129 = vmatpush2.bf16.msra.mxu0 0
        %1130 = vmatprep.subr.bf16.mxu0 0
        %1131 = vmatpush2.bf16.msra.mxu0 0
        %1132 = vmatprep.subr.bf16.mxu0 0
        %1133 = vmatpush2.bf16.msra.mxu0 0
        %1134 = vmatprep.subr.bf16.mxu0 0
        %1135 = vmatpush2.bf16.msra.mxu0 0
        %1136 = vmatprep.mubr.bf16.mxu0 0
        %1137 = vmatmul.mubr.bf16.gmra.mxu0 %v972
        %v1138 = vpop.f32.mrf.mxu0
        %v1139 = vadd.f32 %v1090, %v1138
        %v1140 = vpop.f32.mrf.mxu0
        %v1141 = vpop.f32.mrf.mxu0
        %v1142 = vadd.f32 %v1090, %v1141
        %v1143 = vpop.f32.mrf.mxu0
        %1144 = vdwg.mxu0
        %v1145 = vpack.c.bf16 %v1016, %v1015
        %v1146 = vpack.c.bf16 %v1078, %v1075
        %v1147 = vpack.c.bf16 %v1142, %v1139
        %vm1148 = vcmask 130048
        %v1150 = vsel %vm1148, %v1145, 0
        %v1153 = vsel %vm1148, %v1146, 0
        %1155 = vmatprep.subr.bf16.mxu0 0
        %1156 = vmatpush1.bf16.xpose.msra.mxu0 0
        %1157 = vmatprep.subr.bf16.mxu0 0
        %1158 = vmatpush1.bf16.xpose.msra.mxu0 0
        %1159 = vmatprep.subr.bf16.mxu0 0
        %1160 = vmatpush1.bf16.xpose.msra.mxu0 0
        %1161 = vmatprep.subr.bf16.mxu0 0
        %1162 = vmatpush1.bf16.xpose.msra.mxu0 0
        %1163 = vmatprep.subr.bf16.mxu0 0
        %1164 = vmatpush1.bf16.xpose.msra.mxu0 0
        %1165 = vmatprep.subr.bf16.mxu0 0
        %1166 = vmatpush1.bf16.xpose.msra.mxu0 0
        %1167 = vmatprep.subr.bf16.mxu0 0
        %1168 = vmatpush1.bf16.xpose.msra.mxu0 0
        %1169 = vmatprep.subr.bf16.mxu0 0
        %1170 = vmatpush1.bf16.xpose.msra.mxu0 %v1153
        %1171 = vmatprep.subr.bf16.mxu0 0
        %1172 = vmatpush2.bf16.xpose.msra.mxu0 0
        %1173 = vmatprep.subr.bf16.mxu0 0
        %1174 = vmatpush2.bf16.xpose.msra.mxu0 0
        %1175 = vmatprep.subr.bf16.mxu0 0
        %1176 = vmatpush2.bf16.xpose.msra.mxu0 0
        %1177 = vmatprep.subr.bf16.mxu0 0
        %1178 = vmatpush2.bf16.xpose.msra.mxu0 0
        %1179 = vmatprep.subr.bf16.mxu0 0
        %1180 = vmatpush2.bf16.xpose.msra.mxu0 0
        %1181 = vmatprep.subr.bf16.mxu0 0
        %1182 = vmatpush2.bf16.xpose.msra.mxu0 0
        %1183 = vmatprep.subr.bf16.mxu0 0
        %1184 = vmatpush2.bf16.xpose.msra.mxu0 0
        %1185 = vmatprep.subr.bf16.mxu0 0
        %1186 = vmatpush2.bf16.xpose.msra.mxu0 0
        %1187 = vmatprep.mubr.bf16.mxu0 0
        %1188 = vmatmul.mubr.bf16.gmra.mxu0 %v1150
        %v1189 = vpop.f32.mrf.mxu0
        %v1190 = vadd.f32 %v931, %v1189
        %v1191 = vpop.f32.mrf.mxu0
        %v1192 = vpop.f32.mrf.mxu0
        %v1193 = vadd.f32 %v932, %v1192
        %v1194 = vpop.f32.mrf.mxu0
        %1195 = vdwg.mxu0
        %v1196 = vsel %vm1148, %v1190, -inf
        %1197 = vmax.xlane.f32.xlu0 %v1196
        %v1198 = vpop.xlane.xlu0 %1197
        %v1199 = vsel %vm1148, %v1193, -inf
        %1200 = vmax.xlane.f32.xlu0 %v1199
        %v1201 = vpop.xlane.xlu0 %1200
        %v1202 = vsub.f32 %v1190, %v1198
        %v1203 = vsub.f32 %v1193, %v1201
        %v1204 = vmul.f32 %v1202, 1.442695
        %v1205 = vpow.pop %v1204
        %v1206 = vmul.f32 %v1203, 1.442695
        %v1207 = vpow.pop %v1206
        %v1208 = vsel %vm1148, %v1205, 0.0
        %1209 = vadd.xlane.f32.xlu0 %v1208
        %v1210 = vpop.xlane.xlu0 %1209
        %v1211 = vsel %vm1148, %v1207, 0.0
        %1212 = vadd.xlane.f32.xlu0 %v1211
        %v1213 = vpop.xlane.xlu0 %1212
        %v1214 = vrcp.pop %v1210
        %v1215 = vrcp.pop %v1213
        %v1216 = vmul.f32 %v1205, %v1214
        %v1217 = vmul.f32 %v1207, %v1215
        %v1218 = vpack.c.bf16 %v1217, %v1216
        %v1220 = vsel %vm1148, %v1218, 0
        %1222 = vmatprep.subr.bf16.mxu0 0
        %1223 = vmatpush1.bf16.msra.mxu0 0
        %1224 = vmatprep.subr.bf16.mxu0 0
        %1225 = vmatpush1.bf16.msra.mxu0 0
        %1226 = vmatprep.subr.bf16.mxu0 0
        %1227 = vmatpush1.bf16.msra.mxu0 0
        %1228 = vmatprep.subr.bf16.mxu0 0
        %1229 = vmatpush1.bf16.msra.mxu0 0
        %1230 = vmatprep.subr.bf16.mxu0 0
        %1231 = vmatpush1.bf16.msra.mxu0 0
        %1232 = vmatprep.subr.bf16.mxu0 0
        %1233 = vmatpush1.bf16.msra.mxu0 0
        %1234 = vmatprep.subr.bf16.mxu0 0
        %1235 = vmatpush1.bf16.msra.mxu0 0
        %1236 = vmatprep.subr.bf16.mxu0 0
        %1237 = vmatpush1.bf16.msra.mxu0 %v1147
        %1238 = vmatprep.subr.bf16.mxu0 0
        %1239 = vmatpush2.bf16.msra.mxu0 0
        %1240 = vmatprep.subr.bf16.mxu0 0
        %1241 = vmatpush2.bf16.msra.mxu0 0
        %1242 = vmatprep.subr.bf16.mxu0 0
        %1243 = vmatpush2.bf16.msra.mxu0 0
        %1244 = vmatprep.subr.bf16.mxu0 0
        %1245 = vmatpush2.bf16.msra.mxu0 0
        %1246 = vmatprep.subr.bf16.mxu0 0
        %1247 = vmatpush2.bf16.msra.mxu0 0
        %1248 = vmatprep.subr.bf16.mxu0 0
        %1249 = vmatpush2.bf16.msra.mxu0 0
        %1250 = vmatprep.subr.bf16.mxu0 0
        %1251 = vmatpush2.bf16.msra.mxu0 0
        %1252 = vmatprep.subr.bf16.mxu0 0
        %1253 = vmatpush2.bf16.msra.mxu0 0
        %1254 = vmatprep.mubr.bf16.mxu0 0
        %1255 = vmatmul.mubr.bf16.gmra.mxu0 %v1220
        %v1256 = vpop.f32.mrf.mxu0
        %v1257 = vadd.f32 0.0, %v1256
        %v1258 = vpop.f32.mrf.mxu0
        %v1259 = vpop.f32.mrf.mxu0
        %v1260 = vadd.f32 0.0, %v1259
        %v1261 = vpop.f32.mrf.mxu0
        %1262 = vdwg.mxu0
        %1263 = vst.msk [vmem:[#allocation3] sm:$0xff] %vm1148, %v1257
        %1264 = vst.msk [vmem:[#allocation3 + $0x8] sm:$0xff] %vm1148, %v1260
        %1266 = vrot.lane.b32.xlu0 %v1145, 112
        %v1267 = vpop.permute.xlu0 %1266
        %1269 = vrot.lane.b32.xlu0 %v1146, 112
        %v1270 = vpop.permute.xlu0 %1269
        %v1272 = vsel %vm1148, %v1267, 0
        %v1275 = vsel %vm1148, %v1270, 0
        %1277 = vmatprep.subr.bf16.mxu0 0
        %1278 = vmatpush1.bf16.xpose.msra.mxu0 0
        %1279 = vmatprep.subr.bf16.mxu0 0
        %1280 = vmatpush1.bf16.xpose.msra.mxu0 0
        %1281 = vmatprep.subr.bf16.mxu0 0
        %1282 = vmatpush1.bf16.xpose.msra.mxu0 0
        %1283 = vmatprep.subr.bf16.mxu0 0
        %1284 = vmatpush1.bf16.xpose.msra.mxu0 0
        %1285 = vmatprep.subr.bf16.mxu0 0
        %1286 = vmatpush1.bf16.xpose.msra.mxu0 0
        %1287 = vmatprep.subr.bf16.mxu0 0
        %1288 = vmatpush1.bf16.xpose.msra.mxu0 0
        %1289 = vmatprep.subr.bf16.mxu0 0
        %1290 = vmatpush1.bf16.xpose.msra.mxu0 0
        %1291 = vmatprep.subr.bf16.mxu0 0
        %1292 = vmatpush1.bf16.xpose.msra.mxu0 %v1275
        %1293 = vmatprep.subr.bf16.mxu0 0
        %1294 = vmatpush2.bf16.xpose.msra.mxu0 0
        %1295 = vmatprep.subr.bf16.mxu0 0
        %1296 = vmatpush2.bf16.xpose.msra.mxu0 0
        %1297 = vmatprep.subr.bf16.mxu0 0
        %1298 = vmatpush2.bf16.xpose.msra.mxu0 0
        %1299 = vmatprep.subr.bf16.mxu0 0
        %1300 = vmatpush2.bf16.xpose.msra.mxu0 0
        %1301 = vmatprep.subr.bf16.mxu0 0
        %1302 = vmatpush2.bf16.xpose.msra.mxu0 0
        %1303 = vmatprep.subr.bf16.mxu0 0
        %1304 = vmatpush2.bf16.xpose.msra.mxu0 0
        %1305 = vmatprep.subr.bf16.mxu0 0
        %1306 = vmatpush2.bf16.xpose.msra.mxu0 0
        %1307 = vmatprep.subr.bf16.mxu0 0
        %1308 = vmatpush2.bf16.xpose.msra.mxu0 0
        %1309 = vmatprep.mubr.bf16.mxu0 0
        %1310 = vmatmul.mubr.bf16.gmra.mxu0 %v1272
        %v1311 = vpop.f32.mrf.mxu0
        %v1312 = vadd.f32 %v931, %v1311
        %v1313 = vpop.f32.mrf.mxu0
        %v1314 = vpop.f32.mrf.mxu0
        %v1315 = vadd.f32 %v932, %v1314
        %v1316 = vpop.f32.mrf.mxu0
        %1317 = vdwg.mxu0
        %v1318 = vsel %vm1148, %v1312, -inf
        %1319 = vmax.xlane.f32.xlu0 %v1318
        %v1320 = vpop.xlane.xlu0 %1319
        %v1321 = vsel %vm1148, %v1315, -inf
        %1322 = vmax.xlane.f32.xlu0 %v1321
        %v1323 = vpop.xlane.xlu0 %1322
        %v1324 = vsub.f32 %v1312, %v1320
        %v1325 = vsub.f32 %v1315, %v1323
        %v1326 = vmul.f32 %v1324, 1.442695
        %v1327 = vpow.pop %v1326
        %v1328 = vmul.f32 %v1325, 1.442695
        %v1329 = vpow.pop %v1328
        %v1330 = vsel %vm1148, %v1327, 0.0
        %1331 = vadd.xlane.f32.xlu0 %v1330
        %v1332 = vpop.xlane.xlu0 %1331
        %v1333 = vsel %vm1148, %v1329, 0.0
        %1334 = vadd.xlane.f32.xlu0 %v1333
        %v1335 = vpop.xlane.xlu0 %1334
        %v1336 = vrcp.pop %v1332
        %v1337 = vrcp.pop %v1335
        %v1338 = vmul.f32 %v1327, %v1336
        %v1339 = vmul.f32 %v1329, %v1337
        %v1340 = vpack.c.bf16 %v1339, %v1338
        %1342 = vrot.lane.b32.xlu0 %v1147, 112
        %v1343 = vpop.permute.xlu0 %1342
        %v1346 = vsel %vm1148, %v1340, 0
        %1348 = vmatprep.subr.bf16.mxu0 0
        %1349 = vmatpush1.bf16.msra.mxu0 0
        %1350 = vmatprep.subr.bf16.mxu0 0
        %1351 = vmatpush1.bf16.msra.mxu0 0
        %1352 = vmatprep.subr.bf16.mxu0 0
        %1353 = vmatpush1.bf16.msra.mxu0 0
        %1354 = vmatprep.subr.bf16.mxu0 0
        %1355 = vmatpush1.bf16.msra.mxu0 0
        %1356 = vmatprep.subr.bf16.mxu0 0
        %1357 = vmatpush1.bf16.msra.mxu0 0
        %1358 = vmatprep.subr.bf16.mxu0 0
        %1359 = vmatpush1.bf16.msra.mxu0 0
        %1360 = vmatprep.subr.bf16.mxu0 0
        %1361 = vmatpush1.bf16.msra.mxu0 0
        %1362 = vmatprep.subr.bf16.mxu0 0
        %1363 = vmatpush1.bf16.msra.mxu0 %v1343
        %1364 = vmatprep.subr.bf16.mxu0 0
        %1365 = vmatpush2.bf16.msra.mxu0 0
        %1366 = vmatprep.subr.bf16.mxu0 0
        %1367 = vmatpush2.bf16.msra.mxu0 0
        %1368 = vmatprep.subr.bf16.mxu0 0
        %1369 = vmatpush2.bf16.msra.mxu0 0
        %1370 = vmatprep.subr.bf16.mxu0 0
        %1371 = vmatpush2.bf16.msra.mxu0 0
        %1372 = vmatprep.subr.bf16.mxu0 0
        %1373 = vmatpush2.bf16.msra.mxu0 0
        %1374 = vmatprep.subr.bf16.mxu0 0
        %1375 = vmatpush2.bf16.msra.mxu0 0
        %1376 = vmatprep.subr.bf16.mxu0 0
        %1377 = vmatpush2.bf16.msra.mxu0 0
        %1378 = vmatprep.subr.bf16.mxu0 0
        %1379 = vmatpush2.bf16.msra.mxu0 0
        %1380 = vmatprep.mubr.bf16.mxu0 0
        %1381 = vmatmul.mubr.bf16.gmra.mxu0 %v1346
        %v1382 = vpop.f32.mrf.mxu0
        %v1383 = vadd.f32 0.0, %v1382
        %v1384 = vpop.f32.mrf.mxu0
        %v1385 = vpop.f32.mrf.mxu0
        %v1386 = vadd.f32 0.0, %v1385
        %v1387 = vpop.f32.mrf.mxu0
        %1388 = vdwg.mxu0
        %1391 = vrot.lane.b32.xlu0 %v1383, 16
        %v1392 = vpop.permute.xlu0 %1391
        %1393 = vrot.lane.b32.xlu0 %v1386, 16
        %v1394 = vpop.permute.xlu0 %1393
        %vm1397 = vcmask 261248
        %1398 = vst.msk [vmem:[#allocation3] sm:$0xff] %vm1397, %v1392
        %1399 = vst.msk [vmem:[#allocation3 + $0x8] sm:$0xff] %vm1397, %v1394
        %v1400 = vld [vmem:[#allocation3] sm:$0xff]
        %v1401 = vld [vmem:[#allocation3 + $0x8] sm:$0xff]
        %v1402 = vpack.c.bf16 %v1401, %v1400
        %v1403 = vld [vmem:[%s875] sm:$0xf]
        %v1404 = vld [vmem:[%s875 + $0x4] sm:$0xf]
        %v1405 = vld [vmem:[%s875 + $0x8] sm:$0xf]
        %v1406 = vld [vmem:[%s875 + $0xc] sm:$0xf]
        %v1407 = vld [vmem:[%s878] sm:$0x1]
        %v1409 = vlaneseq
        %v1410 = vshrl.u32 %v1409, 7
        %v1411 = vsub.s32 0, %v1410
        %v1412 = vrot.slane %v1407, %v1411
        %v1418 = vunpack.c.l.b16 %v1403
        %v1419 = vunpack.c.l.b16 %v1404
        %v1420 = vunpack.c.l.b16 %v1405
        %v1421 = vunpack.c.l.b16 %v1406
        %v1422 = vpack.c.b16 %v1419, %v1418
        %v1423 = vpack.c.b16 %v1421, %v1420
        %v1427 = vsel %vm970, %v1402, 0
        %1429 = vmatprep.subr.bf16.mxu0 0
        %1430 = vmatpush1.bf16.msra.mxu0 0
        %1431 = vmatprep.subr.bf16.mxu0 0
        %1432 = vmatpush1.bf16.msra.mxu0 0
        %1433 = vmatprep.subr.bf16.mxu0 0
        %1434 = vmatpush1.bf16.msra.mxu0 0
        %1435 = vmatprep.subr.bf16.mxu0 0
        %1436 = vmatpush1.bf16.msra.mxu0 0
        %1437 = vmatprep.subr.bf16.mxu0 0
        %1438 = vmatpush1.bf16.msra.mxu0 0
        %1439 = vmatprep.subr.bf16.mxu0 0
        %1440 = vmatpush1.bf16.msra.mxu0 0
        %1441 = vmatprep.subr.bf16.mxu0 0
        %1442 = vmatpush1.bf16.msra.mxu0 %v1423
        %1443 = vmatprep.subr.bf16.mxu0 0
        %1444 = vmatpush1.bf16.msra.mxu0 %v1422
        %1445 = vmatprep.subr.bf16.mxu0 0
        %1446 = vmatpush2.bf16.msra.mxu0 0
        %1447 = vmatprep.subr.bf16.mxu0 0
        %1448 = vmatpush2.bf16.msra.mxu0 0
        %1449 = vmatprep.subr.bf16.mxu0 0
        %1450 = vmatpush2.bf16.msra.mxu0 0
        %1451 = vmatprep.subr.bf16.mxu0 0
        %1452 = vmatpush2.bf16.msra.mxu0 0
        %1453 = vmatprep.subr.bf16.mxu0 0
        %1454 = vmatpush2.bf16.msra.mxu0 0
        %1455 = vmatprep.subr.bf16.mxu0 0
        %1456 = vmatpush2.bf16.msra.mxu0 0
        %1457 = vmatprep.subr.bf16.mxu0 0
        %1458 = vmatpush2.bf16.msra.mxu0 0
        %1459 = vmatprep.subr.bf16.mxu0 0
        %1460 = vmatpush2.bf16.msra.mxu0 0
        %1461 = vmatprep.mubr.bf16.mxu0 0
        %1462 = vmatmul.mubr.bf16.gmra.mxu0 %v1427
        %v1463 = vpop.f32.mrf.mxu0
        %v1464 = vadd.f32 %v1412, %v1463
        %v1465 = vpop.f32.mrf.mxu0
        %v1466 = vpop.f32.mrf.mxu0
        %v1467 = vadd.f32 %v1412, %v1466
        %v1468 = vpop.f32.mrf.mxu0
        %1469 = vdwg.mxu0
        %v1470 = vadd.f32 %v944, %v1464
        %v1471 = vadd.f32 %v945, %v1467
        %v1472 = vsel %vm970, %v1470, 0.0
        %1473 = vadd.xlane.f32.xlu0 %v1472
        %v1474 = vpop.xlane.xlu0 %1473
        %v1475 = vsel %vm970, %v1471, 0.0
        %1476 = vadd.xlane.f32.xlu0 %v1475
        %v1477 = vpop.xlane.xlu0 %1476
        %v1478 = vrcp.pop 32.0
        %v1479 = vmul.f32 %v1474, %v1478
        %v1480 = vmul.f32 %v1477, %v1478
        %v1481 = vsub.f32 %v1470, %v1479
        %v1482 = vsub.f32 %v1471, %v1480
        %v1483 = vmul.f32 %v1481, %v1481
        %v1484 = vmul.f32 %v1482, %v1482
        %v1485 = vsel %vm970, %v1483, 0.0
        %1486 = vadd.xlane.f32.xlu0 %v1485
        %v1487 = vpop.xlane.xlu0 %1486
        %v1488 = vsel %vm970, %v1484, 0.0
        %1489 = vadd.xlane.f32.xlu0 %v1488
        %v1490 = vpop.xlane.xlu0 %1489
        %v1491 = vmul.f32 %v1487, %v1478
        %v1492 = vmul.f32 %v1490, %v1478
        %v1493 = vadd.f32 %v1491, 1e-05
        %v1494 = vadd.f32 %v1492, 1e-05
        %v1495 = vrsqrt.pop %v1493
        %v1496 = vrsqrt.pop %v1494
        %v1497 = vmul.f32 %v1481, %v1495
        %v1498 = vmul.f32 %v1482, %v1496
        %v1499 = vld [vmem:[%s881] sm:$0x1]
        %v1501 = vlaneseq
        %v1502 = vshrl.u32 %v1501, 7
        %v1503 = vsub.s32 0, %v1502
        %v1504 = vrot.slane %v1499, %v1503
        %v1506 = vmul.f32 %v1497, %v1504
        %v1507 = vmul.f32 %v1498, %v1504
        %v1508 = vld [vmem:[%s884] sm:$0x1]
        %v1510 = vlaneseq
        %v1511 = vshrl.u32 %v1510, 7
        %v1512 = vsub.s32 0, %v1511
        %v1513 = vrot.slane %v1508, %v1512
        %v1515 = vadd.f32 %v1506, %v1513
        %v1516 = vadd.f32 %v1507, %v1513
        %1517 = vst.msk [vmem:[#allocation4] sm:$0xff] %vm970, 0.0
        %1518 = vst.msk [vmem:[#allocation4 + $0x8] sm:$0xff] %vm970, 0.0
        %vm1519 = vcmask 254976
        %1520 = vst.msk [vmem:[#allocation4 + $0x10] sm:$0x3] %vm1519, 0.0
        %v1521 = vmul.f32 %v1515, %v914
        %v1522 = vmul.f32 %v1516, %v919
        %1523 = vst.msk [vmem:[#allocation4 + $0x1] sm:$0xff] %vm970, %v1521
        %1524 = vst.msk [vmem:[#allocation4 + $0x9] sm:$0xff] %vm970, %v1522
        %v1525 = vld [vmem:[#allocation4] sm:$0xff]
        %v1526 = vld [vmem:[#allocation4 + $0x8] sm:$0xff]
        %v1527 = vpack.c.bf16 %v1526, %v1525
        %v1528 = vld [vmem:[%s889] sm:$0xf]
        %v1529 = vld [vmem:[%s889 + $0x4] sm:$0xf]
        %v1530 = vld [vmem:[%s889 + $0x8] sm:$0xf]
        %v1531 = vld [vmem:[%s889 + $0xc] sm:$0xf]
        %v1532 = vld [vmem:[#allocation4 + $0x1] sm:$0xff]
        %v1533 = vld [vmem:[#allocation4 + $0x9] sm:$0xff]
        %v1534 = vpack.c.bf16 %v1533, %v1532
        %s1535 = scalar_lea.vmem %s889, 16
        %v1536 = vld [vmem:[%s1535] sm:$0xf]
        %v1537 = vld [vmem:[%s1535 + $0x4] sm:$0xf]
        %v1538 = vld [vmem:[%s1535 + $0x8] sm:$0xf]
        %v1539 = vld [vmem:[%s1535 + $0xc] sm:$0xf]
        %v1544 = vunpack.c.l.b16 %v1536
        %v1545 = vunpack.c.l.b16 %v1537
        %v1546 = vunpack.c.l.b16 %v1538
        %v1547 = vunpack.c.l.b16 %v1539
        %v1548 = vpack.c.b16 %v1545, %v1544
        %v1549 = vpack.c.b16 %v1547, %v1546
        %v1553 = vsel %vm970, %v1534, 0
        %1555 = vmatprep.subr.bf16.mxu0 0
        %1556 = vmatpush1.bf16.msra.mxu0 0
        %1557 = vmatprep.subr.bf16.mxu0 0
        %1558 = vmatpush1.bf16.msra.mxu0 0
        %1559 = vmatprep.subr.bf16.mxu0 0
        %1560 = vmatpush1.bf16.msra.mxu0 0
        %1561 = vmatprep.subr.bf16.mxu0 0
        %1562 = vmatpush1.bf16.msra.mxu0 0
        %1563 = vmatprep.subr.bf16.mxu0 0
        %1564 = vmatpush1.bf16.msra.mxu0 0
        %1565 = vmatprep.subr.bf16.mxu0 0
        %1566 = vmatpush1.bf16.msra.mxu0 0
        %1567 = vmatprep.subr.bf16.mxu0 0
        %1568 = vmatpush1.bf16.msra.mxu0 %v1549
        %1569 = vmatprep.subr.bf16.mxu0 0
        %1570 = vmatpush1.bf16.msra.mxu0 %v1548
        %1571 = vmatprep.subr.bf16.mxu0 0
        %1572 = vmatpush2.bf16.msra.mxu0 0
        %1573 = vmatprep.subr.bf16.mxu0 0
        %1574 = vmatpush2.bf16.msra.mxu0 0
        %1575 = vmatprep.subr.bf16.mxu0 0
        %1576 = vmatpush2.bf16.msra.mxu0 0
        %1577 = vmatprep.subr.bf16.mxu0 0
        %1578 = vmatpush2.bf16.msra.mxu0 0
        %1579 = vmatprep.subr.bf16.mxu0 0
        %1580 = vmatpush2.bf16.msra.mxu0 0
        %1581 = vmatprep.subr.bf16.mxu0 0
        %1582 = vmatpush2.bf16.msra.mxu0 0
        %1583 = vmatprep.subr.bf16.mxu0 0
        %1584 = vmatpush2.bf16.msra.mxu0 0
        %1585 = vmatprep.subr.bf16.mxu0 0
        %1586 = vmatpush2.bf16.msra.mxu0 0
        %1587 = vmatprep.mubr.bf16.mxu0 0
        %1588 = vmatmul.mubr.bf16.gmra.mxu0 %v1553
        %v1589 = vpop.f32.mrf.mxu0
        %v1590 = vadd.f32 0.0, %v1589
        %v1591 = vpop.f32.mrf.mxu0
        %v1592 = vpop.f32.mrf.mxu0
        %v1593 = vadd.f32 0.0, %v1592
        %v1594 = vpop.f32.mrf.mxu0
        %1595 = vdwg.mxu0
        %v1600 = vunpack.c.l.b16 %v1528
        %v1601 = vunpack.c.l.b16 %v1529
        %v1602 = vunpack.c.l.b16 %v1530
        %v1603 = vunpack.c.l.b16 %v1531
        %v1604 = vpack.c.b16 %v1601, %v1600
        %v1605 = vpack.c.b16 %v1603, %v1602
        %v1609 = vsel %vm970, %v1527, 0
        %1611 = vmatprep.subr.bf16.mxu0 0
        %1612 = vmatpush1.bf16.msra.mxu0 0
        %1613 = vmatprep.subr.bf16.mxu0 0
        %1614 = vmatpush1.bf16.msra.mxu0 0
        %1615 = vmatprep.subr.bf16.mxu0 0
        %1616 = vmatpush1.bf16.msra.mxu0 0
        %1617 = vmatprep.subr.bf16.mxu0 0
        %1618 = vmatpush1.bf16.msra.mxu0 0
        %1619 = vmatprep.subr.bf16.mxu0 0
        %1620 = vmatpush1.bf16.msra.mxu0 0
        %1621 = vmatprep.subr.bf16.mxu0 0
        %1622 = vmatpush1.bf16.msra.mxu0 0
        %1623 = vmatprep.subr.bf16.mxu0 0
        %1624 = vmatpush1.bf16.msra.mxu0 %v1605
        %1625 = vmatprep.subr.bf16.mxu0 0
        %1626 = vmatpush1.bf16.msra.mxu0 %v1604
        %1627 = vmatprep.subr.bf16.mxu0 0
        %1628 = vmatpush2.bf16.msra.mxu0 0
        %1629 = vmatprep.subr.bf16.mxu0 0
        %1630 = vmatpush2.bf16.msra.mxu0 0
        %1631 = vmatprep.subr.bf16.mxu0 0
        %1632 = vmatpush2.bf16.msra.mxu0 0
        %1633 = vmatprep.subr.bf16.mxu0 0
        %1634 = vmatpush2.bf16.msra.mxu0 0
        %1635 = vmatprep.subr.bf16.mxu0 0
        %1636 = vmatpush2.bf16.msra.mxu0 0
        %1637 = vmatprep.subr.bf16.mxu0 0
        %1638 = vmatpush2.bf16.msra.mxu0 0
        %1639 = vmatprep.subr.bf16.mxu0 0
        %1640 = vmatpush2.bf16.msra.mxu0 0
        %1641 = vmatprep.subr.bf16.mxu0 0
        %1642 = vmatpush2.bf16.msra.mxu0 0
        %1643 = vmatprep.mubr.bf16.mxu0 0
        %1644 = vmatmul.mubr.bf16.gmra.mxu0 %v1609
        %v1645 = vpop.f32.mrf.mxu0
        %v1646 = vadd.f32 %v1590, %v1645
        %v1647 = vpop.f32.mrf.mxu0
        %v1648 = vpop.f32.mrf.mxu0
        %v1649 = vadd.f32 %v1593, %v1648
        %v1650 = vpop.f32.mrf.mxu0
        %1651 = vdwg.mxu0
        %v1652 = vld [vmem:[#allocation4 + $0x2] sm:$0xff]
        %v1653 = vld [vmem:[#allocation4 + $0xa] sm:$0xff]
        %v1654 = vpack.c.bf16 %v1653, %v1652
        %s1655 = scalar_lea.vmem %s889, 32
        %v1656 = vld [vmem:[%s1655] sm:$0xf]
        %v1657 = vld [vmem:[%s1655 + $0x4] sm:$0xf]
        %v1658 = vld [vmem:[%s1655 + $0x8] sm:$0xf]
        %v1659 = vld [vmem:[%s1655 + $0xc] sm:$0xf]
        %v1664 = vunpack.c.l.b16 %v1656
        %v1665 = vunpack.c.l.b16 %v1657
        %v1666 = vunpack.c.l.b16 %v1658
        %v1667 = vunpack.c.l.b16 %v1659
        %v1668 = vpack.c.b16 %v1665, %v1664
        %v1669 = vpack.c.b16 %v1667, %v1666
        %v1673 = vsel %vm970, %v1654, 0
        %1675 = vmatprep.subr.bf16.mxu0 0
        %1676 = vmatpush1.bf16.msra.mxu0 0
        %1677 = vmatprep.subr.bf16.mxu0 0
        %1678 = vmatpush1.bf16.msra.mxu0 0
        %1679 = vmatprep.subr.bf16.mxu0 0
        %1680 = vmatpush1.bf16.msra.mxu0 0
        %1681 = vmatprep.subr.bf16.mxu0 0
        %1682 = vmatpush1.bf16.msra.mxu0 0
        %1683 = vmatprep.subr.bf16.mxu0 0
        %1684 = vmatpush1.bf16.msra.mxu0 0
        %1685 = vmatprep.subr.bf16.mxu0 0
        %1686 = vmatpush1.bf16.msra.mxu0 0
        %1687 = vmatprep.subr.bf16.mxu0 0
        %1688 = vmatpush1.bf16.msra.mxu0 %v1669
        %1689 = vmatprep.subr.bf16.mxu0 0
        %1690 = vmatpush1.bf16.msra.mxu0 %v1668
        %1691 = vmatprep.subr.bf16.mxu0 0
        %1692 = vmatpush2.bf16.msra.mxu0 0
        %1693 = vmatprep.subr.bf16.mxu0 0
        %1694 = vmatpush2.bf16.msra.mxu0 0
        %1695 = vmatprep.subr.bf16.mxu0 0
        %1696 = vmatpush2.bf16.msra.mxu0 0
        %1697 = vmatprep.subr.bf16.mxu0 0
        %1698 = vmatpush2.bf16.msra.mxu0 0
        %1699 = vmatprep.subr.bf16.mxu0 0
        %1700 = vmatpush2.bf16.msra.mxu0 0
        %1701 = vmatprep.subr.bf16.mxu0 0
        %1702 = vmatpush2.bf16.msra.mxu0 0
        %1703 = vmatprep.subr.bf16.mxu0 0
        %1704 = vmatpush2.bf16.msra.mxu0 0
        %1705 = vmatprep.subr.bf16.mxu0 0
        %1706 = vmatpush2.bf16.msra.mxu0 0
        %1707 = vmatprep.mubr.bf16.mxu0 0
        %1708 = vmatmul.mubr.bf16.gmra.mxu0 %v1673
        %v1709 = vpop.f32.mrf.mxu0
        %v1710 = vadd.f32 0.0, %v1709
        %v1711 = vpop.f32.mrf.mxu0
        %v1712 = vpop.f32.mrf.mxu0
        %v1713 = vadd.f32 0.0, %v1712
        %v1714 = vpop.f32.mrf.mxu0
        %1715 = vdwg.mxu0
        %v1716 = vadd.f32 %v1646, %v1710
        %v1717 = vadd.f32 %v1649, %v1713
        %v1718 = vld [vmem:[%s892] sm:$0x1]
        %v1720 = vlaneseq
        %v1721 = vshrl.u32 %v1720, 7
        %v1722 = vsub.s32 0, %v1721
        %v1723 = vrot.slane %v1718, %v1722
        %v1725 = vadd.f32 %v1716, %v1723
        %v1726 = vadd.f32 %v1717, %v1723
        %v1727 = vmax.f32 %v1725, 0.0
        %v1728 = vmax.f32 %v1726, 0.0
        %vm1729 = vcmask 523264
        %1730 = vst.msk [vmem:[#allocation5] sm:$0xff] %vm1729, 0.0
        %1731 = vst.msk [vmem:[#allocation5 + $0x8] sm:$0xff] %vm1729, 0.0
        %vm1732 = vcmask 517120
        %1733 = vst.msk [vmem:[#allocation5 + $0x10] sm:$0x3] %vm1732, 0.0
        %v1734 = vmul.f32 %v1727, %v914
        %v1735 = vmul.f32 %v1728, %v919
        %1736 = vst.msk [vmem:[#allocation5 + $0x1] sm:$0xff] %vm1729, %v1734
        %1737 = vst.msk [vmem:[#allocation5 + $0x9] sm:$0xff] %vm1729, %v1735
        %v1738 = vld [vmem:[#allocation5] sm:$0xff]
        %v1739 = vld [vmem:[#allocation5 + $0x8] sm:$0xff]
        %v1740 = vpack.c.bf16 %v1739, %v1738
        %v1741 = vld [vmem:[%s897] sm:$0xf]
        %v1742 = vld [vmem:[%s897 + $0x4] sm:$0xf]
        %v1743 = vld [vmem:[%s897 + $0x8] sm:$0xf]
        %v1744 = vld [vmem:[%s897 + $0xc] sm:$0xf]
        %v1745 = vld [vmem:[%s897 + $0x10] sm:$0xf]
        %v1746 = vld [vmem:[%s897 + $0x14] sm:$0xf]
        %v1747 = vld [vmem:[%s897 + $0x18] sm:$0xf]
        %v1748 = vld [vmem:[%s897 + $0x1c] sm:$0xf]
        %v1749 = vld [vmem:[#allocation5 + $0x1] sm:$0xff]
        %v1750 = vld [vmem:[#allocation5 + $0x9] sm:$0xff]
        %v1751 = vpack.c.bf16 %v1750, %v1749
        %s1752 = scalar_lea.vmem %s897, 32
        %v1753 = vld [vmem:[%s1752] sm:$0xf]
        %v1754 = vld [vmem:[%s1752 + $0x4] sm:$0xf]
        %v1755 = vld [vmem:[%s1752 + $0x8] sm:$0xf]
        %v1756 = vld [vmem:[%s1752 + $0xc] sm:$0xf]
        %v1757 = vld [vmem:[%s1752 + $0x10] sm:$0xf]
        %v1758 = vld [vmem:[%s1752 + $0x14] sm:$0xf]
        %v1759 = vld [vmem:[%s1752 + $0x18] sm:$0xf]
        %v1760 = vld [vmem:[%s1752 + $0x1c] sm:$0xf]
        %v1769 = vunpack.c.l.b16 %v1753
        %v1770 = vunpack.c.l.b16 %v1754
        %v1771 = vunpack.c.l.b16 %v1755
        %v1772 = vunpack.c.l.b16 %v1756
        %v1773 = vunpack.c.l.b16 %v1757
        %v1774 = vunpack.c.l.b16 %v1758
        %v1775 = vunpack.c.l.b16 %v1759
        %v1776 = vunpack.c.l.b16 %v1760
        %v1777 = vpack.c.b16 %v1770, %v1769
        %v1778 = vpack.c.b16 %v1772, %v1771
        %v1779 = vpack.c.b16 %v1774, %v1773
        %v1780 = vpack.c.b16 %v1776, %v1775
        %v1786 = vsel %vm1729, %v1751, 0
        %1788 = vmatprep.subr.bf16.mxu0 0
        %1789 = vmatpush1.bf16.msra.mxu0 0
        %1790 = vmatprep.subr.bf16.mxu0 0
        %1791 = vmatpush1.bf16.msra.mxu0 0
        %1792 = vmatprep.subr.bf16.mxu0 0
        %1793 = vmatpush1.bf16.msra.mxu0 0
        %1794 = vmatprep.subr.bf16.mxu0 0
        %1795 = vmatpush1.bf16.msra.mxu0 0
        %1796 = vmatprep.subr.bf16.mxu0 0
        %1797 = vmatpush1.bf16.msra.mxu0 %v1780
        %1798 = vmatprep.subr.bf16.mxu0 0
        %1799 = vmatpush1.bf16.msra.mxu0 %v1779
        %1800 = vmatprep.subr.bf16.mxu0 0
        %1801 = vmatpush1.bf16.msra.mxu0 %v1778
        %1802 = vmatprep.subr.bf16.mxu0 0
        %1803 = vmatpush1.bf16.msra.mxu0 %v1777
        %1804 = vmatprep.subr.bf16.mxu0 0
        %1805 = vmatpush2.bf16.msra.mxu0 0
        %1806 = vmatprep.subr.bf16.mxu0 0
        %1807 = vmatpush2.bf16.msra.mxu0 0
        %1808 = vmatprep.subr.bf16.mxu0 0
        %1809 = vmatpush2.bf16.msra.mxu0 0
        %1810 = vmatprep.subr.bf16.mxu0 0
        %1811 = vmatpush2.bf16.msra.mxu0 0
        %1812 = vmatprep.subr.bf16.mxu0 0
        %1813 = vmatpush2.bf16.msra.mxu0 0
        %1814 = vmatprep.subr.bf16.mxu0 0
        %1815 = vmatpush2.bf16.msra.mxu0 0
        %1816 = vmatprep.subr.bf16.mxu0 0
        %1817 = vmatpush2.bf16.msra.mxu0 0
        %1818 = vmatprep.subr.bf16.mxu0 0
        %1819 = vmatpush2.bf16.msra.mxu0 0
        %1820 = vmatprep.mubr.bf16.mxu0 0
        %1821 = vmatmul.mubr.bf16.gmra.mxu0 %v1786
        %v1822 = vpop.f32.mrf.mxu0
        %v1823 = vadd.f32 0.0, %v1822
        %v1824 = vpop.f32.mrf.mxu0
        %v1825 = vpop.f32.mrf.mxu0
        %v1826 = vadd.f32 0.0, %v1825
        %v1827 = vpop.f32.mrf.mxu0
        %1828 = vdwg.mxu0
        %v1837 = vunpack.c.l.b16 %v1741
        %v1838 = vunpack.c.l.b16 %v1742
        %v1839 = vunpack.c.l.b16 %v1743
        %v1840 = vunpack.c.l.b16 %v1744
        %v1841 = vunpack.c.l.b16 %v1745
        %v1842 = vunpack.c.l.b16 %v1746
        %v1843 = vunpack.c.l.b16 %v1747
        %v1844 = vunpack.c.l.b16 %v1748
        %v1845 = vpack.c.b16 %v1838, %v1837
        %v1846 = vpack.c.b16 %v1840, %v1839
        %v1847 = vpack.c.b16 %v1842, %v1841
        %v1848 = vpack.c.b16 %v1844, %v1843
        %v1854 = vsel %vm1729, %v1740, 0
        %1856 = vmatprep.subr.bf16.mxu0 0
        %1857 = vmatpush1.bf16.msra.mxu0 0
        %1858 = vmatprep.subr.bf16.mxu0 0
        %1859 = vmatpush1.bf16.msra.mxu0 0
        %1860 = vmatprep.subr.bf16.mxu0 0
        %1861 = vmatpush1.bf16.msra.mxu0 0
        %1862 = vmatprep.subr.bf16.mxu0 0
        %1863 = vmatpush1.bf16.msra.mxu0 0
        %1864 = vmatprep.subr.bf16.mxu0 0
        %1865 = vmatpush1.bf16.msra.mxu0 %v1848
        %1866 = vmatprep.subr.bf16.mxu0 0
        %1867 = vmatpush1.bf16.msra.mxu0 %v1847
        %1868 = vmatprep.subr.bf16.mxu0 0
        %1869 = vmatpush1.bf16.msra.mxu0 %v1846
        %1870 = vmatprep.subr.bf16.mxu0 0
        %1871 = vmatpush1.bf16.msra.mxu0 %v1845
        %1872 = vmatprep.subr.bf16.mxu0 0
        %1873 = vmatpush2.bf16.msra.mxu0 0
        %1874 = vmatprep.subr.bf16.mxu0 0
        %1875 = vmatpush2.bf16.msra.mxu0 0
        %1876 = vmatprep.subr.bf16.mxu0 0
        %1877 = vmatpush2.bf16.msra.mxu0 0
        %1878 = vmatprep.subr.bf16.mxu0 0
        %1879 = vmatpush2.bf16.msra.mxu0 0
        %1880 = vmatprep.subr.bf16.mxu0 0
        %1881 = vmatpush2.bf16.msra.mxu0 0
        %1882 = vmatprep.subr.bf16.mxu0 0
        %1883 = vmatpush2.bf16.msra.mxu0 0
        %1884 = vmatprep.subr.bf16.mxu0 0
        %1885 = vmatpush2.bf16.msra.mxu0 0
        %1886 = vmatprep.subr.bf16.mxu0 0
        %1887 = vmatpush2.bf16.msra.mxu0 0
        %1888 = vmatprep.mubr.bf16.mxu0 0
        %1889 = vmatmul.mubr.bf16.gmra.mxu0 %v1854
        %v1890 = vpop.f32.mrf.mxu0
        %v1891 = vadd.f32 %v1823, %v1890
        %v1892 = vpop.f32.mrf.mxu0
        %v1893 = vpop.f32.mrf.mxu0
        %v1894 = vadd.f32 %v1826, %v1893
        %v1895 = vpop.f32.mrf.mxu0
        %1896 = vdwg.mxu0
        %v1897 = vld [vmem:[#allocation5 + $0x2] sm:$0xff]
        %v1898 = vld [vmem:[#allocation5 + $0xa] sm:$0xff]
        %v1899 = vpack.c.bf16 %v1898, %v1897
        %s1900 = scalar_lea.vmem %s897, 64
        %v1901 = vld [vmem:[%s1900] sm:$0xf]
        %v1902 = vld [vmem:[%s1900 + $0x4] sm:$0xf]
        %v1903 = vld [vmem:[%s1900 + $0x8] sm:$0xf]
        %v1904 = vld [vmem:[%s1900 + $0xc] sm:$0xf]
        %v1905 = vld [vmem:[%s1900 + $0x10] sm:$0xf]
        %v1906 = vld [vmem:[%s1900 + $0x14] sm:$0xf]
        %v1907 = vld [vmem:[%s1900 + $0x18] sm:$0xf]
        %v1908 = vld [vmem:[%s1900 + $0x1c] sm:$0xf]
        %v1917 = vunpack.c.l.b16 %v1901
        %v1918 = vunpack.c.l.b16 %v1902
        %v1919 = vunpack.c.l.b16 %v1903
        %v1920 = vunpack.c.l.b16 %v1904
        %v1921 = vunpack.c.l.b16 %v1905
        %v1922 = vunpack.c.l.b16 %v1906
        %v1923 = vunpack.c.l.b16 %v1907
        %v1924 = vunpack.c.l.b16 %v1908
        %v1925 = vpack.c.b16 %v1918, %v1917
        %v1926 = vpack.c.b16 %v1920, %v1919
        %v1927 = vpack.c.b16 %v1922, %v1921
        %v1928 = vpack.c.b16 %v1924, %v1923
        %v1934 = vsel %vm1729, %v1899, 0
        %1936 = vmatprep.subr.bf16.mxu0 0
        %1937 = vmatpush1.bf16.msra.mxu0 0
        %1938 = vmatprep.subr.bf16.mxu0 0
        %1939 = vmatpush1.bf16.msra.mxu0 0
        %1940 = vmatprep.subr.bf16.mxu0 0
        %1941 = vmatpush1.bf16.msra.mxu0 0
        %1942 = vmatprep.subr.bf16.mxu0 0
        %1943 = vmatpush1.bf16.msra.mxu0 0
        %1944 = vmatprep.subr.bf16.mxu0 0
        %1945 = vmatpush1.bf16.msra.mxu0 %v1928
        %1946 = vmatprep.subr.bf16.mxu0 0
        %1947 = vmatpush1.bf16.msra.mxu0 %v1927
        %1948 = vmatprep.subr.bf16.mxu0 0
        %1949 = vmatpush1.bf16.msra.mxu0 %v1926
        %1950 = vmatprep.subr.bf16.mxu0 0
        %1951 = vmatpush1.bf16.msra.mxu0 %v1925
        %1952 = vmatprep.subr.bf16.mxu0 0
        %1953 = vmatpush2.bf16.msra.mxu0 0
        %1954 = vmatprep.subr.bf16.mxu0 0
        %1955 = vmatpush2.bf16.msra.mxu0 0
        %1956 = vmatprep.subr.bf16.mxu0 0
        %1957 = vmatpush2.bf16.msra.mxu0 0
        %1958 = vmatprep.subr.bf16.mxu0 0
        %1959 = vmatpush2.bf16.msra.mxu0 0
        %1960 = vmatprep.subr.bf16.mxu0 0
        %1961 = vmatpush2.bf16.msra.mxu0 0
        %1962 = vmatprep.subr.bf16.mxu0 0
        %1963 = vmatpush2.bf16.msra.mxu0 0
        %1964 = vmatprep.subr.bf16.mxu0 0
        %1965 = vmatpush2.bf16.msra.mxu0 0
        %1966 = vmatprep.subr.bf16.mxu0 0
        %1967 = vmatpush2.bf16.msra.mxu0 0
        %1968 = vmatprep.mubr.bf16.mxu0 0
        %1969 = vmatmul.mubr.bf16.gmra.mxu0 %v1934
        %v1970 = vpop.f32.mrf.mxu0
        %v1971 = vadd.f32 0.0, %v1970
        %v1972 = vpop.f32.mrf.mxu0
        %v1973 = vpop.f32.mrf.mxu0
        %v1974 = vadd.f32 0.0, %v1973
        %v1975 = vpop.f32.mrf.mxu0
        %1976 = vdwg.mxu0
        %v1977 = vadd.f32 %v1891, %v1971
        %v1978 = vadd.f32 %v1894, %v1974
        %v1979 = vld [vmem:[%s900] sm:$0x1]
        %v1981 = vlaneseq
        %v1982 = vshrl.u32 %v1981, 7
        %v1983 = vsub.s32 0, %v1982
        %v1984 = vrot.slane %v1979, %v1983
        %v1986 = vadd.f32 %v1977, %v1984
        %v1987 = vadd.f32 %v1978, %v1984
        %v1988 = vmul.f32 %v1986, %v914
        %v1989 = vmul.f32 %v1987, %v919
        %v1990 = vadd.f32 %v1515, %v1988
        %v1991 = vadd.f32 %v1516, %v1989
        %v1992 = vsel %vm970, %v1990, 0.0
        %1993 = vadd.xlane.f32.xlu0 %v1992
        %v1994 = vpop.xlane.xlu0 %1993
        %v1995 = vsel %vm970, %v1991, 0.0
        %1996 = vadd.xlane.f32.xlu0 %v1995
        %v1997 = vpop.xlane.xlu0 %1996
        %v1998 = vmul.f32 %v1994, %v1478
        %v1999 = vmul.f32 %v1997, %v1478
        %v2000 = vsub.f32 %v1990, %v1998
        %v2001 = vsub.f32 %v1991, %v1999
        %v2002 = vmul.f32 %v2000, %v2000
        %v2003 = vmul.f32 %v2001, %v2001
        %v2004 = vsel %vm970, %v2002, 0.0
        %2005 = vadd.xlane.f32.xlu0 %v2004
        %v2006 = vpop.xlane.xlu0 %2005
        %v2007 = vsel %vm970, %v2003, 0.0
        %2008 = vadd.xlane.f32.xlu0 %v2007
        %v2009 = vpop.xlane.xlu0 %2008
        %v2010 = vmul.f32 %v2006, %v1478
        %v2011 = vmul.f32 %v2009, %v1478
        %v2012 = vadd.f32 %v2010, 1e-05
        %v2013 = vadd.f32 %v2011, 1e-05
        %v2014 = vrsqrt.pop %v2012
        %v2015 = vrsqrt.pop %v2013
        %v2016 = vmul.f32 %v2000, %v2014
        %v2017 = vmul.f32 %v2001, %v2015
        %v2018 = vld [vmem:[%s903] sm:$0x1]
        %v2020 = vlaneseq
        %v2021 = vshrl.u32 %v2020, 7
        %v2022 = vsub.s32 0, %v2021
        %v2023 = vrot.slane %v2018, %v2022
        %v2025 = vmul.f32 %v2016, %v2023
        %v2026 = vmul.f32 %v2017, %v2023
        %v2027 = vld [vmem:[%s906] sm:$0x1]
        %v2029 = vlaneseq
        %v2030 = vshrl.u32 %v2029, 7
        %v2031 = vsub.s32 0, %v2030
        %v2032 = vrot.slane %v2027, %v2031
        %v2034 = vadd.f32 %v2025, %v2032
        %v2035 = vadd.f32 %v2026, %v2032
        %2036 = vst.msk [vmem:[#allocation2] sm:$0xff] %vm970, %v2034
        %2037 = vst.msk [vmem:[#allocation2 + $0x8] sm:$0xff] %vm970, %v2035
        %p2038 = scmp.eq.s32.totalorder %s38, 1
        // Predicated region
        $region101: #{tpu_custom_call.1} parent=95 // pred_check
          %p2039 = pneg %p2038
        $region102: #{tpu_custom_call.1} parent=95 // pred_check_branch
          %2041 = sbr.rel (%p2039) target = $region104
        $region103: #{tpu_custom_call.1} parent=95 // pred_region
          %v2042 = vmul.f32 %v2034, %v914
          %v2043 = vmul.f32 %v2035, %v919
          %2044 = vst.msk [vmem:[%s833] sm:$0xff] %vm970, %v2042
          %2045 = vst.msk [vmem:[%s833 + $0x8] sm:$0xff] %vm970, %v2043
        $region104: #{tpu_custom_call.1} parent=95 // pred_fallthru
          _
        %s2046 = sand.u32 %s547, 1
        %s2047 = scalar_lea.sflag [#allocation7], %s2046
        %s2048 = sand.u32 %s547, 1
        %s2049 = smul.addr %s2048, 16
        %s2050 = scalar_lea.vmem [#allocation6], %s2049
        // Predicated region
        $region105: #{tpu_custom_call.1} parent=95 // pred_check
          %p2051 = pneg %p557
        $region106: #{tpu_custom_call.1} parent=95 // pred_check_branch
          %2053 = sbr.rel (%p2051) target = $region108
        $region107: #{tpu_custom_call.1} parent=95 // pred_region
          %s2055 = ssub.s32 256, 256
          %2056 = vsyncadd %s2047, %s2055
          %s2057 = smul.addr %s37, 2
          %s2058 = smul.addr %s2057, 128
          %s2059 = scalar_lea.hbm %s19, %s2058
          %s2060 = sshll.u32 %s2050, 4
          %s2061 = int_to_ptr.vmem [resolvable:$true] %s2060
          %2066 = dma.vmem_to_hbm [thread:$0]  %s2061, 256, %s2059, %s2047, 128, 128, 8
        $region108: #{tpu_custom_call.1} parent=95 // pred_fallthru
          _
      $region96: #{tpu_custom_call.1} parent=5 // pred_fallthru
        _
      %p2067 = scmp.le.s32.totalorder 2, %s28
      // Predicated region
      $region109: #{tpu_custom_call.1} parent=5 // pred_check
        %p2068 = pneg %p2067
      $region110: #{tpu_custom_call.1} parent=5 // pred_check_branch
        %2070 = sbr.rel (%p2068) target = $region112
      $region111: #{tpu_custom_call.1} parent=5 // pred_region
        %s2071 = ssub.s32 %s28, 2
        // Predicated region
        $region113: #{tpu_custom_call.1} parent=111 // pred_check
          %p2072 = pneg %p563
        $region114: #{tpu_custom_call.1} parent=111 // pred_check_branch
          %2074 = sbr.rel (%p2072) target = $region116
        $region115: #{tpu_custom_call.1} parent=111 // pred_region
          %s2075 = sand.u32 %s548, 1
          %s2076 = scalar_lea.sflag [#allocation7], %s2075
          %s2077 = sand.u32 %s548, 1
          %s2078 = smul.addr %s2077, 16
          %s2079 = scalar_lea.vmem [#allocation6], %s2078
          %2080 = dma.done %s2076, 256
        $region116: #{tpu_custom_call.1} parent=111 // pred_fallthru
          _
      $region112: #{tpu_custom_call.1} parent=5 // pred_fallthru
        _
    $region6: #{tpu_custom_call.1} parent=1 // loop_footer
      %s32 = sadd.s32 1, %s28
    $region7: #{tpu_custom_call.1} parent=1 // loop_footer_branch
      %27 = sbr.rel target = $region3
    $region8: #{tpu_custom_call.1} parent=1 // loop_exit
      _
    %2081 = vsyncpa [#allocation7], 1
    %s2082 = scalar_lea.sflag [#allocation7], 1
    %2083 = vsyncpa %s2082, 1

</llo_original>
